<compile_context>
chip_gen: v7x
topology: tpu7x:2x2x1
jax: 0.10.0
libtpu: 0.0.40
codegen_flags: <defaults>
</compile_context>

<pallas_src>
import numpy as np
import jax
import jax.numpy as jnp
from jax import lax
from jax.experimental import pallas as pl
from jax.experimental.pallas import tpu as pltpu

CHAR_EMBED = 32     # RoInflectModule._conf_char_embed_size
LSTM_SIZE = 256     # RoInflectModule._conf_lstm_size
DENSE_SIZE = 512    # RoInflectModule._conf_dense_size


def _ro_inflect_kernel(maxlen_ref,                       # scalar prefetch (SMEM), (1,) int32
                       x_ref, len_ref,                   # (T, TB, E) f32, (TB, 1) int32
                       wih_ref, whh_ref, blstm_ref,      # (E,4H) bf16, (H,4H) bf16, (1,4H) f32
                       w1_ref, b1_ref, w2_ref, b2_ref,   # (H,D) bf16, (1,D) f32, (D,M) bf16, (1,M) f32
                       out_ref,                          # (TB, M) f32
                       gx_ref):                          # scratch VMEM (T, TB, 4H) f32
    T, TB, E = x_ref.shape
    H = whh_ref.shape[0]

    # ---- hoisted input projection: one big matmul, off the serial path ----
    x = x_ref[...].astype(jnp.bfloat16)                                  # (T, TB, E)
    gx = jnp.dot(x.reshape(T * TB, E), wih_ref[...],
                 preferred_element_type=jnp.float32)                     # (T*TB, 4H)
    gx_ref[...] = (gx + blstm_ref[...]).reshape(T, TB, 4 * H)

    lens = len_ref[...]                                                  # (TB, 1) int32
    whh = whh_ref[...]                                                   # (H, 4H) bf16

    h0 = jnp.zeros((TB, H), jnp.float32)
    c0 = jnp.zeros((TB, H), jnp.float32)

    def step(t, carry):
        h, c = carry
        gates = (jnp.dot(h.astype(jnp.bfloat16), whh,
                         preferred_element_type=jnp.float32)
                 + gx_ref[t])                                            # (TB, 4H)
        # Gate columns pre-permuted to [i, f, o, g]: one contiguous sigmoid
        # stream + one tanh slice.
        sig = jax.nn.sigmoid(gates[:, :3 * H])
        g = jnp.tanh(gates[:, 3 * H:])
        i = sig[:, 0 * H:1 * H]
        f = sig[:, 1 * H:2 * H]
        o = sig[:, 2 * H:3 * H]
        c_new = f * c + i * g
        h_new = o * jnp.tanh(c_new)
        # pack_sequence semantics: freeze h/c past each word's length so the
        # carried h equals PyTorch's h_n per sequence.
        valid = lens > t                                                 # (TB, 1)
        h = jnp.where(valid, h_new, h)
        c = jnp.where(valid, c_new, c)
        return h, c

    # Loop only to the batch max length (padding slack is skipped).
    # TODO(synk): dynamic trip count precludes static unrolling of the loop.
    max_len = maxlen_ref[0]
    h_n, _ = lax.fori_loop(0, max_len, step, (h0, c0))

    z = jnp.tanh(jnp.dot(h_n.astype(jnp.bfloat16), w1_ref[...],
                         preferred_element_type=jnp.float32) + b1_ref[...])
    # TODO(synk): Dropout(p=0.3) is identity at inference; stochastic masking
    # (pltpu.prng_*) not implemented here.
    out = jax.nn.sigmoid(jnp.dot(z.astype(jnp.bfloat16), w2_ref[...],
                                 preferred_element_type=jnp.float32) + b2_ref[...])
    out_ref[...] = out


def _reorder_gates(w):
    """Permute LSTM gate columns [i, f, g, o] -> [i, f, o, g] (last axis)."""
    H = LSTM_SIZE
    return jnp.concatenate(
        [w[..., :2 * H], w[..., 3 * H:4 * H], w[..., 2 * H:3 * H]], axis=-1)


def ro_inflect_forward(params, char_ids, lengths):
    """char_ids: (B, T) int32 padded ids; lengths: (B,) int32 valid lengths."""
    B, T = char_ids.shape
    H = LSTM_SIZE
    msd = params["b2"].shape[-1]

    # Batch block: multiple of 8 sublanes, up to 128 MXU rows per block.
    TB = min(128, ((B + 7) // 8) * 8)
    padded_B = ((B + TB - 1) // TB) * TB
    pad_b = padded_B - B

    ids = jnp.pad(char_ids, ((0, pad_b), (0, 0)))
    lens = jnp.pad(lengths, (0, pad_b)).astype(jnp.int32)

    # Embedding gather, producing time-major (T, padded_B, E) directly.
    x = jnp.take(params["embed"], ids.swapaxes(0, 1), axis=0).astype(jnp.float32)

    lens2 = lens.reshape(padded_B, 1)
    max_len = jnp.max(lens).reshape(1).astype(jnp.int32)

    # Weight prep: gate reorder + bf16 matmul operands (biases stay f32).
    w_ih = _reorder_gates(params["w_ih"]).astype(jnp.bfloat16)
    w_hh = _reorder_gates(params["w_hh"]).astype(jnp.bfloat16)
    b_lstm = _reorder_gates(params["b_lstm"]).astype(jnp.float32)
    w1 = params["w1"].astype(jnp.bfloat16)
    b1 = params["b1"].astype(jnp.float32)

    # Lane-dense output: pad MSD dim to a multiple of 128, slice afterwards.
    msd_pad = ((msd + 127) // 128) * 128
    w2 = jnp.pad(params["w2"], ((0, 0), (0, msd_pad - msd))).astype(jnp.bfloat16)
    b2 = jnp.pad(params["b2"], ((0, 0), (0, msd_pad - msd))).astype(jnp.float32)

    n_blocks = padded_B // TB

    grid_spec = pltpu.PrefetchScalarGridSpec(
        num_scalar_prefetch=1,
        grid=(n_blocks,),
        in_specs=[
            pl.BlockSpec((T, TB, CHAR_EMBED), lambda b, ml: (0, b, 0)),
            pl.BlockSpec((TB, 1), lambda b, ml: (b, 0)),
            pl.BlockSpec((CHAR_EMBED, 4 * H), lambda b, ml: (0, 0)),
            pl.BlockSpec((H, 4 * H), lambda b, ml: (0, 0)),
            pl.BlockSpec((1, 4 * H), lambda b, ml: (0, 0)),
            pl.BlockSpec((H, DENSE_SIZE), lambda b, ml: (0, 0)),
            pl.BlockSpec((1, DENSE_SIZE), lambda b, ml: (0, 0)),
            pl.BlockSpec((DENSE_SIZE, msd_pad), lambda b, ml: (0, 0)),
            pl.BlockSpec((1, msd_pad), lambda b, ml: (0, 0)),
        ],
        out_specs=pl.BlockSpec((TB, msd_pad), lambda b, ml: (b, 0)),
        scratch_shapes=[pltpu.VMEM((T, TB, 4 * H), jnp.float32)],
    )

    out = pl.pallas_call(
        _ro_inflect_kernel,
        out_shape=jax.ShapeDtypeStruct((padded_B, msd_pad), jnp.float32),
        grid_spec=grid_spec,
        compiler_params=pltpu.CompilerParams(
            dimension_semantics=("parallel",),          # shards batch blocks over v7x's 2 TCs
            vmem_limit_bytes=32 * 1024 * 1024),
    )(max_len, x, lens2, w_ih, w_hh, b_lstm, w1, b1, w2, b2)

    return out[:B, :msd]


def make_params(char_vocab_dim, msd_vector_dim, key):
    ks = jax.random.split(key, 8)
    s = 0.1
    return {
        "embed":  s * jax.random.normal(ks[0], (char_vocab_dim, CHAR_EMBED), jnp.float32),
        # Stored (in, out), PyTorch gate order [i, f, g, o]; wrapper reorders.
        "w_ih":   s * jax.random.normal(ks[1], (CHAR_EMBED, 4 * LSTM_SIZE), jnp.float32),
        "w_hh":   s * jax.random.normal(ks[2], (LSTM_SIZE, 4 * LSTM_SIZE), jnp.float32),
        "b_lstm": s * jax.random.normal(ks[3], (1, 4 * LSTM_SIZE), jnp.float32),  # b_ih + b_hh
        "w1":     s * jax.random.normal(ks[4], (LSTM_SIZE, DENSE_SIZE), jnp.float32),
        "b1":     s * jax.random.normal(ks[5], (1, DENSE_SIZE), jnp.float32),
        "w2":     s * jax.random.normal(ks[6], (DENSE_SIZE, msd_vector_dim), jnp.float32),
        "b2":     s * jax.random.normal(ks[7], (1, msd_vector_dim), jnp.float32),
    }


def ref_forward(params, char_ids, lengths):
    """Pure-JAX f32 reference (PyTorch gate order) for a correctness check."""
    emb = jnp.take(params["embed"], char_ids, axis=0)  # (B, T, E)
    B, T, _ = emb.shape
    H = LSTM_SIZE
    h = jnp.zeros((B, H), jnp.float32)
    c = jnp.zeros((B, H), jnp.float32)
    for t in range(T):
        g = emb[:, t, :] @ params["w_ih"] + h @ params["w_hh"] + params["b_lstm"]
        i = jax.nn.sigmoid(g[:, 0 * H:1 * H])
        f = jax.nn.sigmoid(g[:, 1 * H:2 * H])
        gg = jnp.tanh(g[:, 2 * H:3 * H])
        o = jax.nn.sigmoid(g[:, 3 * H:4 * H])
        c_new = f * c + i * gg
        h_new = o * jnp.tanh(c_new)
        valid = (lengths > t).reshape(B, 1)
        h = jnp.where(valid, h_new, h)
        c = jnp.where(valid, c_new, c)
    z = jnp.tanh(h @ params["w1"] + params["b1"])
    return jax.nn.sigmoid(z @ params["w2"] + params["b2"])


if __name__ == "__main__":
    char_vocab_dim = 100
    msd_vector_dim = 100          # not a multiple of 128 -> exercises lane padding
    B, T = 4, 8

    key = jax.random.PRNGKey(0)
    k_params, k_ids = jax.random.split(key)
    params = make_params(char_vocab_dim, msd_vector_dim, k_params)

    # A batch of 4 "words" of variable length, padded to T=8.
    lengths = jnp.array([5, 8, 3, 6], dtype=jnp.int32)
    char_ids = jax.random.randint(k_ids, (B, T), 1, char_vocab_dim, dtype=jnp.int32)
    pad_mask = jnp.arange(T)[None, :] < lengths[:, None]
    char_ids = jnp.where(pad_mask, char_ids, 0)

    fwd = jax.jit(ro_inflect_forward)
    out = jax.block_until_ready(fwd(params, char_ids, lengths))

    ref = jax.block_until_ready(ref_forward(params, char_ids, lengths))
    assert out.shape == (B, msd_vector_dim)
    # bf16 matmul operands (f32 accumulation) -> loosened tolerance vs. f32 ref.
    np.testing.assert_allclose(np.asarray(out), np.asarray(ref), atol=3e-2, rtol=3e-2)

    print("KERNEL_OK")
</pallas_src>

<mosaic_0001>
module attributes {stable_mosaic.version = 11 : i64} {
  func.func @_ro_inflect_kernel(%arg0: i32, %arg1: memref<1xi32, #tpu.memory_space<smem>>, %arg2: memref<8x8x32xf32, #tpu.memory_space<vmem>>, %arg3: memref<8x1xi32, #tpu.memory_space<vmem>>, %arg4: memref<32x1024xbf16, #tpu.memory_space<vmem>>, %arg5: memref<256x1024xbf16, #tpu.memory_space<vmem>>, %arg6: memref<1x1024xf32, #tpu.memory_space<vmem>>, %arg7: memref<256x512xbf16, #tpu.memory_space<vmem>>, %arg8: memref<1x512xf32, #tpu.memory_space<vmem>>, %arg9: memref<512x128xbf16, #tpu.memory_space<vmem>>, %arg10: memref<1x128xf32, #tpu.memory_space<vmem>>, %arg11: memref<8x128xf32, #tpu.memory_space<vmem>>, %arg12: memref<8x8x1024xf32, #tpu.memory_space<vmem>>) attributes {dimension_semantics = [#tpu.dimension_semantics<parallel>], iteration_bounds = array<i64: 1>, scalar_prefetch = 1 : i64, scratch_operands = 1 : i64, tpu.core_type = #tpu.core_type<tc>, window_params = [{transform_indices = @transform_0, window_bounds = array<i64: 8, 8, 32>}, {transform_indices = @transform_1, window_bounds = array<i64: 8, 1>}, {pipeline_mode = #tpu.pipeline_mode<synchronous>, transform_indices = @transform_2, window_bounds = array<i64: 32, 1024>}, {pipeline_mode = #tpu.pipeline_mode<synchronous>, transform_indices = @transform_3, window_bounds = array<i64: 256, 1024>}, {pipeline_mode = #tpu.pipeline_mode<synchronous>, transform_indices = @transform_4, window_bounds = array<i64: 1, 1024>}, {pipeline_mode = #tpu.pipeline_mode<synchronous>, transform_indices = @transform_5, window_bounds = array<i64: 256, 512>}, {pipeline_mode = #tpu.pipeline_mode<synchronous>, transform_indices = @transform_6, window_bounds = array<i64: 1, 512>}, {pipeline_mode = #tpu.pipeline_mode<synchronous>, transform_indices = @transform_7, window_bounds = array<i64: 512, 128>}, {pipeline_mode = #tpu.pipeline_mode<synchronous>, transform_indices = @transform_8, window_bounds = array<i64: 1, 128>}, {transform_indices = @transform_9, window_bounds = array<i64: 8, 128>}]} {
    %c0 = arith.constant 0 : index
    %c0_0 = arith.constant 0 : index
    %c0_1 = arith.constant 0 : index
    %0 = vector.load %arg2[%c0, %c0_0, %c0_1] : memref<8x8x32xf32, #tpu.memory_space<vmem>>, vector<8x8x32xf32>
    %1 = arith.truncf %0 : vector<8x8x32xf32> to vector<8x8x32xbf16>
    %2 = vector.shape_cast %1 : vector<8x8x32xbf16> to vector<64x32xbf16>
    %c0_2 = arith.constant 0 : index
    %c0_3 = arith.constant 0 : index
    %3 = vector.load %arg4[%c0_2, %c0_3] : memref<32x1024xbf16, #tpu.memory_space<vmem>>, vector<32x1024xbf16>
    %cst = arith.constant dense<0.000000e+00> : vector<64x1024xf32>
    %4 = tpu.matmul %2, %3, %cst {dimension_numbers = #tpu.dot_dimension_numbers<[1], [0], [0], [1], [0, 0, 1, 1], [], []>} : vector<64x32xbf16>, vector<32x1024xbf16>, vector<64x1024xf32> -> vector<64x1024xf32>
    %c0_4 = arith.constant 0 : index
    %c0_5 = arith.constant 0 : index
    %5 = vector.load %arg6[%c0_4, %c0_5] : memref<1x1024xf32, #tpu.memory_space<vmem>>, vector<1x1024xf32>
    %6 = vector.broadcast %5 : vector<1x1024xf32> to vector<64x1024xf32>
    %7 = arith.addf %4, %6 : vector<64x1024xf32>
    %8 = vector.shape_cast %7 : vector<64x1024xf32> to vector<8x8x1024xf32>
    %c0_6 = arith.constant 0 : index
    %c0_7 = arith.constant 0 : index
    %c0_8 = arith.constant 0 : index
    %9 = vector.load %arg12[%c0_6, %c0_7, %c0_8] : memref<8x8x1024xf32, #tpu.memory_space<vmem>>, vector<8x8x1024xf32>
    tpu.vector_store %arg12[%c0_6, %c0_7, %c0_8], %8 {strides = array<i32>} : memref<8x8x1024xf32, #tpu.memory_space<vmem>>, vector<8x8x1024xf32>,
    %c0_9 = arith.constant 0 : index
    %c0_10 = arith.constant 0 : index
    %10 = vector.load %arg3[%c0_9, %c0_10] : memref<8x1xi32, #tpu.memory_space<vmem>>, vector<8x1xi32>
    %c0_11 = arith.constant 0 : index
    %c0_12 = arith.constant 0 : index
    %11 = vector.load %arg5[%c0_11, %c0_12] : memref<256x1024xbf16, #tpu.memory_space<vmem>>, vector<256x1024xbf16>
    %cst_13 = arith.constant 0.000000e+00 : f32
    %12 = vector.broadcast %cst_13 : f32 to vector<8x256xf32>
    %cst_14 = arith.constant 0.000000e+00 : f32
    %13 = vector.broadcast %cst_14 : f32 to vector<8x256xf32>
    %c0_15 = arith.constant 0 : index
    %14 = memref.load %arg1[%c0_15] : memref<1xi32, #tpu.memory_space<smem>>
    %c0_i32 = arith.constant 0 : i32
    %15 = arith.subi %14, %c0_i32 : i32
    %16 = arith.addi %c0_i32, %15 : i32
    %c1_i32 = arith.constant 1 : i32
    %17:2 = scf.for %arg13 = %c0_i32 to %16 step %c1_i32 iter_args(%arg14 = %12, %arg15 = %13) -> (vector<8x256xf32>, vector<8x256xf32>)  : i32 {
      %37 = arith.truncf %arg14 : vector<8x256xf32> to vector<8x256xbf16>
      %cst_29 = arith.constant dense<0.000000e+00> : vector<8x1024xf32>
      %38 = tpu.matmul %37, %11, %cst_29 {dimension_numbers = #tpu.dot_dimension_numbers<[1], [0], [0], [1], [0, 0, 1, 1], [], []>} : vector<8x256xbf16>, vector<256x1024xbf16>, vector<8x1024xf32> -> vector<8x1024xf32>
      %39 = arith.index_cast %arg13 : i32 to index
      %c0_30 = arith.constant 0 : index
      %c0_31 = arith.constant 0 : index
      %40 = vector.load %arg12[%39, %c0_30, %c0_31] : memref<8x8x1024xf32, #tpu.memory_space<vmem>>, vector<1x8x1024xf32>
      %41 = vector.shape_cast %40 : vector<1x8x1024xf32> to vector<8x1024xf32>
      %42 = arith.addf %38, %41 : vector<8x1024xf32>
      %43 = vector.extract_strided_slice %42 {offsets = [0, 0], sizes = [8, 768], strides = [1, 1]} : vector<8x1024xf32> to vector<8x768xf32>
      %44 = arith.negf %43 : vector<8x768xf32>
      %45 = math.exp %44 : vector<8x768xf32>
      %cst_32 = arith.constant 1.000000e+00 : f32
      %46 = vector.broadcast %cst_32 : f32 to vector<8x768xf32>
      %47 = arith.addf %46, %45 : vector<8x768xf32>
      %48 = arith.divf %46, %47 : vector<8x768xf32>
      %49 = vector.extract_strided_slice %42 {offsets = [0, 768], sizes = [8, 256], strides = [1, 1]} : vector<8x1024xf32> to vector<8x256xf32>
      %50 = math.tanh %49 : vector<8x256xf32>
      %51 = vector.extract_strided_slice %48 {offsets = [0, 0], sizes = [8, 256], strides = [1, 1]} : vector<8x768xf32> to vector<8x256xf32>
      %52 = vector.extract_strided_slice %48 {offsets = [0, 256], sizes = [8, 256], strides = [1, 1]} : vector<8x768xf32> to vector<8x256xf32>
      %53 = vector.extract_strided_slice %48 {offsets = [0, 512], sizes = [8, 256], strides = [1, 1]} : vector<8x768xf32> to vector<8x256xf32>
      %54 = arith.mulf %52, %arg15 : vector<8x256xf32>
      %55 = arith.mulf %51, %50 : vector<8x256xf32>
      %56 = arith.addf %54, %55 : vector<8x256xf32>
      %57 = math.tanh %56 : vector<8x256xf32>
      %58 = arith.mulf %53, %57 : vector<8x256xf32>
      %59 = vector.broadcast %arg13 : i32 to vector<8x1xi32>
      %60 = arith.cmpi sgt, %10, %59 : vector<8x1xi32>
      %61 = vector.shape_cast %60 : vector<8x1xi1> to vector<8x1xi1>
      %62 = vector.broadcast %61 : vector<8x1xi1> to vector<8x256xi1>
      %63 = arith.select %62, %58, %arg14 : vector<8x256xi1>, vector<8x256xf32>
      %64 = vector.shape_cast %60 : vector<8x1xi1> to vector<8x1xi1>
      %65 = vector.broadcast %64 : vector<8x1xi1> to vector<8x256xi1>
      %66 = arith.select %65, %56, %arg15 : vector<8x256xi1>, vector<8x256xf32>
      scf.yield %63, %66 : vector<8x256xf32>, vector<8x256xf32>
    }
    %18 = arith.truncf %17#0 : vector<8x256xf32> to vector<8x256xbf16>
    %c0_16 = arith.constant 0 : index
    %c0_17 = arith.constant 0 : index
    %19 = vector.load %arg7[%c0_16, %c0_17] : memref<256x512xbf16, #tpu.memory_space<vmem>>, vector<256x512xbf16>
    %cst_18 = arith.constant dense<0.000000e+00> : vector<8x512xf32>
    %20 = tpu.matmul %18, %19, %cst_18 {dimension_numbers = #tpu.dot_dimension_numbers<[1], [0], [0], [1], [0, 0, 1, 1], [], []>} : vector<8x256xbf16>, vector<256x512xbf16>, vector<8x512xf32> -> vector<8x512xf32>
    %c0_19 = arith.constant 0 : index
    %c0_20 = arith.constant 0 : index
    %21 = vector.load %arg8[%c0_19, %c0_20] : memref<1x512xf32, #tpu.memory_space<vmem>>, vector<1x512xf32>
    %22 = vector.broadcast %21 : vector<1x512xf32> to vector<8x512xf32>
    %23 = arith.addf %20, %22 : vector<8x512xf32>
    %24 = math.tanh %23 : vector<8x512xf32>
    %25 = arith.truncf %24 : vector<8x512xf32> to vector<8x512xbf16>
    %c0_21 = arith.constant 0 : index
    %c0_22 = arith.constant 0 : index
    %26 = vector.load %arg9[%c0_21, %c0_22] : memref<512x128xbf16, #tpu.memory_space<vmem>>, vector<512x128xbf16>
    %cst_23 = arith.constant dense<0.000000e+00> : vector<8x128xf32>
    %27 = tpu.matmul %25, %26, %cst_23 {dimension_numbers = #tpu.dot_dimension_numbers<[1], [0], [0], [1], [0, 0, 1, 1], [], []>} : vector<8x512xbf16>, vector<512x128xbf16>, vector<8x128xf32> -> vector<8x128xf32>
    %c0_24 = arith.constant 0 : index
    %c0_25 = arith.constant 0 : index
    %28 = vector.load %arg10[%c0_24, %c0_25] : memref<1x128xf32, #tpu.memory_space<vmem>>, vector<1x128xf32>
    %29 = vector.broadcast %28 : vector<1x128xf32> to vector<8x128xf32>
    %30 = arith.addf %27, %29 : vector<8x128xf32>
    %31 = arith.negf %30 : vector<8x128xf32>
    %32 = math.exp %31 : vector<8x128xf32>
    %cst_26 = arith.constant 1.000000e+00 : f32
    %33 = vector.broadcast %cst_26 : f32 to vector<8x128xf32>
    %34 = arith.addf %33, %32 : vector<8x128xf32>
    %35 = arith.divf %33, %34 : vector<8x128xf32>
    %c0_27 = arith.constant 0 : index
    %c0_28 = arith.constant 0 : index
    %36 = vector.load %arg11[%c0_27, %c0_28] : memref<8x128xf32, #tpu.memory_space<vmem>>, vector<8x128xf32>
    tpu.vector_store %arg11[%c0_27, %c0_28], %35 {strides = array<i32>} : memref<8x128xf32, #tpu.memory_space<vmem>>, vector<8x128xf32>,
    return
  }
  func.func @transform_0(%arg0: i32, %arg1: memref<1xi32, #tpu.memory_space<smem>>) -> (i32, i32, i32) {
    %c0_i32 = arith.constant 0 : i32
    %c0_i32_0 = arith.constant 0 : i32
    %c0_i32_1 = arith.constant 0 : i32
    return %c0_i32, %arg0, %c0_i32_0 : i32, i32, i32
  }
  func.func @transform_1(%arg0: i32, %arg1: memref<1xi32, #tpu.memory_space<smem>>) -> (i32, i32) {
    %c0_i32 = arith.constant 0 : i32
    %c0_i32_0 = arith.constant 0 : i32
    return %arg0, %c0_i32 : i32, i32
  }
  func.func @transform_2(%arg0: i32, %arg1: memref<1xi32, #tpu.memory_space<smem>>) -> (i32, i32) {
    %c0_i32 = arith.constant 0 : i32
    %c0_i32_0 = arith.constant 0 : i32
    %c0_i32_1 = arith.constant 0 : i32
    return %c0_i32, %c0_i32_0 : i32, i32
  }
  func.func @transform_3(%arg0: i32, %arg1: memref<1xi32, #tpu.memory_space<smem>>) -> (i32, i32) {
    %c0_i32 = arith.constant 0 : i32
    %c0_i32_0 = arith.constant 0 : i32
    %c0_i32_1 = arith.constant 0 : i32
    return %c0_i32, %c0_i32_0 : i32, i32
  }
  func.func @transform_4(%arg0: i32, %arg1: memref<1xi32, #tpu.memory_space<smem>>) -> (i32, i32) {
    %c0_i32 = arith.constant 0 : i32
    %c0_i32_0 = arith.constant 0 : i32
    %c0_i32_1 = arith.constant 0 : i32
    return %c0_i32, %c0_i32_0 : i32, i32
  }
  func.func @transform_5(%arg0: i32, %arg1: memref<1xi32, #tpu.memory_space<smem>>) -> (i32, i32) {
    %c0_i32 = arith.constant 0 : i32
    %c0_i32_0 = arith.constant 0 : i32
    %c0_i32_1 = arith.constant 0 : i32
    return %c0_i32, %c0_i32_0 : i32, i32
  }
  func.func @transform_6(%arg0: i32, %arg1: memref<1xi32, #tpu.memory_space<smem>>) -> (i32, i32) {
    %c0_i32 = arith.constant 0 : i32
    %c0_i32_0 = arith.constant 0 : i32
    %c0_i32_1 = arith.constant 0 : i32
    return %c0_i32, %c0_i32_0 : i32, i32
  }
  func.func @transform_7(%arg0: i32, %arg1: memref<1xi32, #tpu.memory_space<smem>>) -> (i32, i32) {
    %c0_i32 = arith.constant 0 : i32
    %c0_i32_0 = arith.constant 0 : i32
    %c0_i32_1 = arith.constant 0 : i32
    return %c0_i32, %c0_i32_0 : i32, i32
  }
  func.func @transform_8(%arg0: i32, %arg1: memref<1xi32, #tpu.memory_space<smem>>) -> (i32, i32) {
    %c0_i32 = arith.constant 0 : i32
    %c0_i32_0 = arith.constant 0 : i32
    %c0_i32_1 = arith.constant 0 : i32
    return %c0_i32, %c0_i32_0 : i32, i32
  }
  func.func @transform_9(%arg0: i32, %arg1: memref<1xi32, #tpu.memory_space<smem>>) -> (i32, i32) {
    %c0_i32 = arith.constant 0 : i32
    %c0_i32_0 = arith.constant 0 : i32
    return %arg0, %c0_i32 : i32, i32
  }
}

</mosaic_0001>

<llo_original>
// kernel: ro_inflect_forward.1
$region0: #{ro_inflect_forward.1}
  #allocation0 [shape = 'u32[]', space=smem, size = 0x4, offset = 0x4, fixed_abs, tag = 'smem constant byte address 0x4 - core index']
  #allocation1 [shape = 'u32[144,128]{1,0:T(1,128)}', space=vmem, size = 0x12000, scoped, tag = 'internal scratch']
  #allocation2 [shape = 'f32[8,8,1024]{2,1,0:T(8,128)}', space=vmem, size = 0x40000, scoped, tag = 'scratch operand']
  #allocation3 [shape = 's32[1]{0}', space=sflag, size = 0x4, scoped, tag = 'scoped memory for ro_inflect_forward.1']
  #allocation4 [shape = 's32[1]{0:T(128)S(6)}', space=smem, size = 0x200, scoped, tag = 'prefetched SMEM operand 0']
  %s0 = inlined_call_operand.<no memory space> [shape: s32[1], index: 0, kind: input, shape index: {}]
  %s1 = inlined_call_operand.vmem [shape: f32[8,8,32], index: 1, kind: input, shape index: {}]
  %s2 = inlined_call_operand.vmem [shape: s32[8,1], index: 2, kind: input, shape index: {}]
  %s3 = inlined_call_operand.vmem [shape: bf16[32,1024], index: 3, kind: input, shape index: {}]
  %s4 = inlined_call_operand.vmem [shape: bf16[256,1024], index: 4, kind: input, shape index: {}]
  %s5 = inlined_call_operand.vmem [shape: f32[1,1024], index: 5, kind: input, shape index: {}]
  %s6 = inlined_call_operand.vmem [shape: bf16[256,512], index: 6, kind: input, shape index: {}]
  %s7 = inlined_call_operand.vmem [shape: f32[1,512], index: 7, kind: input, shape index: {}]
  %s8 = inlined_call_operand.vmem [shape: bf16[512,128], index: 8, kind: input, shape index: {}]
  %s9 = inlined_call_operand.vmem [shape: f32[1,128], index: 9, kind: input, shape index: {}]
  %s10 = inlined_call_operand.vmem [shape: f32[8,128], index: 10, kind: output, shape index: {}]
  %s11 = sld [smem:[#allocation0]]
  $region53: #{ro_inflect_forward.1} parent=0
    _
  %s13 = ssub.s32 1, %s11
  %s14 = scalar_select 0, %s13, %s11
  %15 = sst [smem:[#allocation4]] %s0
  // Predicated region
  $region2: #{ro_inflect_forward.1} parent=0 // pred_check
    _
  $region3: #{ro_inflect_forward.1} parent=0 // pred_check_branch
    %17 = sbr.rel (0) target = $region5
  $region4: #{ro_inflect_forward.1} parent=0 // pred_region
    _
  $region5: #{ro_inflect_forward.1} parent=0 // pred_fallthru
    _
  // Predicated region
  $region6: #{ro_inflect_forward.1} parent=0 // pred_check
    _
  $region7: #{ro_inflect_forward.1} parent=0 // pred_check_branch
    %19 = sbr.rel (0) target = $region9
  $region8: #{ro_inflect_forward.1} parent=0 // pred_region
    _
  $region9: #{ro_inflect_forward.1} parent=0 // pred_fallthru
    _
  // Predicated region
  $region10: #{ro_inflect_forward.1} parent=0 // pred_check
    _
  $region11: #{ro_inflect_forward.1} parent=0 // pred_check_branch
    %21 = sbr.rel (0) target = $region13
  $region12: #{ro_inflect_forward.1} parent=0 // pred_region
    _
  $region13: #{ro_inflect_forward.1} parent=0 // pred_fallthru
    _
  // Predicated region
  $region14: #{ro_inflect_forward.1} parent=0 // pred_check
    _
  $region15: #{ro_inflect_forward.1} parent=0 // pred_check_branch
    %23 = sbr.rel (0) target = $region17
  $region16: #{ro_inflect_forward.1} parent=0 // pred_region
    _
  $region17: #{ro_inflect_forward.1} parent=0 // pred_fallthru
    _
  // Predicated region
  $region18: #{ro_inflect_forward.1} parent=0 // pred_check
    _
  $region19: #{ro_inflect_forward.1} parent=0 // pred_check_branch
    %25 = sbr.rel (0) target = $region21
  $region20: #{ro_inflect_forward.1} parent=0 // pred_region
    _
  $region21: #{ro_inflect_forward.1} parent=0 // pred_fallthru
    _
  // Predicated region
  $region22: #{ro_inflect_forward.1} parent=0 // pred_check
    _
  $region23: #{ro_inflect_forward.1} parent=0 // pred_check_branch
    %27 = sbr.rel (0) target = $region25
  $region24: #{ro_inflect_forward.1} parent=0 // pred_region
    _
  $region25: #{ro_inflect_forward.1} parent=0 // pred_fallthru
    _
  // Predicated region
  $region26: #{ro_inflect_forward.1} parent=0 // pred_check
    _
  $region27: #{ro_inflect_forward.1} parent=0 // pred_check_branch
    %29 = sbr.rel (0) target = $region29
  $region28: #{ro_inflect_forward.1} parent=0 // pred_region
    _
  $region29: #{ro_inflect_forward.1} parent=0 // pred_fallthru
    _
  // Predicated region
  $region30: #{ro_inflect_forward.1} parent=0 // pred_check
    _
  $region31: #{ro_inflect_forward.1} parent=0 // pred_check_branch
    %31 = sbr.rel (0) target = $region33
  $region32: #{ro_inflect_forward.1} parent=0 // pred_region
    _
  $region33: #{ro_inflect_forward.1} parent=0 // pred_fallthru
    _
  // Predicated region
  $region34: #{ro_inflect_forward.1} parent=0 // pred_check
    _
  $region35: #{ro_inflect_forward.1} parent=0 // pred_check_branch
    %33 = sbr.rel (0) target = $region37
  $region36: #{ro_inflect_forward.1} parent=0 // pred_region
    _
  $region37: #{ro_inflect_forward.1} parent=0 // pred_fallthru
    _
  %v35 = vld [vmem:[%s1] sm:$0xff]
  %v36 = vld [vmem:[%s1 + $0x8] sm:$0xff]
  %v37 = vld [vmem:[%s1 + $0x10] sm:$0xff]
  %v38 = vld [vmem:[%s1 + $0x18] sm:$0xff]
  %v39 = vld [vmem:[%s1 + $0x20] sm:$0xff]
  %v40 = vld [vmem:[%s1 + $0x28] sm:$0xff]
  %v41 = vld [vmem:[%s1 + $0x30] sm:$0xff]
  %v42 = vld [vmem:[%s1 + $0x38] sm:$0xff]
  %v43 = vpack.c.bf16 %v35, %v35
  %v44 = vpack.c.bf16 %v36, %v36
  %v45 = vpack.c.bf16 %v37, %v37
  %v46 = vpack.c.bf16 %v38, %v38
  %v47 = vpack.c.bf16 %v39, %v39
  %v48 = vpack.c.bf16 %v40, %v40
  %v49 = vpack.c.bf16 %v41, %v41
  %v50 = vpack.c.bf16 %v42, %v42
  %v51 = vld [vmem:[%s3] sm:$0xff]
  %v52 = vld [vmem:[%s3 + $0x8] sm:$0xff]
  %v53 = vld [vmem:[%s3 + $0x10] sm:$0xff]
  %v54 = vld [vmem:[%s3 + $0x18] sm:$0xff]
  %v55 = vld [vmem:[%s3 + $0x20] sm:$0xff]
  %v56 = vld [vmem:[%s3 + $0x28] sm:$0xff]
  %v57 = vld [vmem:[%s3 + $0x30] sm:$0xff]
  %v58 = vld [vmem:[%s3 + $0x38] sm:$0xff]
  %v59 = vld [vmem:[%s3 + $0x40] sm:$0xff]
  %v60 = vld [vmem:[%s3 + $0x48] sm:$0xff]
  %v61 = vld [vmem:[%s3 + $0x50] sm:$0xff]
  %v62 = vld [vmem:[%s3 + $0x58] sm:$0xff]
  %v63 = vld [vmem:[%s3 + $0x60] sm:$0xff]
  %v64 = vld [vmem:[%s3 + $0x68] sm:$0xff]
  %v65 = vld [vmem:[%s3 + $0x70] sm:$0xff]
  %v66 = vld [vmem:[%s3 + $0x78] sm:$0xff]
  %v67 = vld [vmem:[%s5] sm:$0xff]
  %v69 = vlaneseq
  %v70 = vshrl.u32 %v69, 7
  %v71 = vsub.s32 0, %v70
  %v72 = vrot.slane %v67, %v71
  %v73 = vlaneseq
  %v74 = vshrl.u32 %v73, 7
  %v75 = vsub.s32 1, %v74
  %v76 = vrot.slane %v67, %v75
  %v77 = vlaneseq
  %v78 = vshrl.u32 %v77, 7
  %v79 = vsub.s32 2, %v78
  %v80 = vrot.slane %v67, %v79
  %v81 = vlaneseq
  %v82 = vshrl.u32 %v81, 7
  %v83 = vsub.s32 3, %v82
  %v84 = vrot.slane %v67, %v83
  %v85 = vlaneseq
  %v86 = vshrl.u32 %v85, 7
  %v87 = vsub.s32 4, %v86
  %v88 = vrot.slane %v67, %v87
  %v89 = vlaneseq
  %v90 = vshrl.u32 %v89, 7
  %v91 = vsub.s32 5, %v90
  %v92 = vrot.slane %v67, %v91
  %v93 = vlaneseq
  %v94 = vshrl.u32 %v93, 7
  %v95 = vsub.s32 6, %v94
  %v96 = vrot.slane %v67, %v95
  %v97 = vlaneseq
  %v98 = vshrl.u32 %v97, 7
  %v99 = vsub.s32 7, %v98
  %v100 = vrot.slane %v67, %v99
  %v117 = vunpack.c.l.b16 %v43
  %v118 = vunpack.c.l.b16 %v44
  %v119 = vunpack.c.l.b16 %v45
  %v120 = vunpack.c.l.b16 %v46
  %v121 = vunpack.c.l.b16 %v47
  %v122 = vunpack.c.l.b16 %v48
  %v123 = vunpack.c.l.b16 %v49
  %v124 = vunpack.c.l.b16 %v50
  %v125 = vpack.c.b16 %v118, %v117
  %v126 = vpack.c.b16 %v120, %v119
  %v127 = vpack.c.b16 %v122, %v121
  %v128 = vpack.c.b16 %v124, %v123
  %v145 = vunpack.c.l.b16 %v51
  %v146 = vunpack.c.h.b16 %v51
  %v147 = vunpack.c.l.b16 %v52
  %v148 = vunpack.c.h.b16 %v52
  %v149 = vunpack.c.l.b16 %v53
  %v150 = vunpack.c.h.b16 %v53
  %v151 = vunpack.c.l.b16 %v54
  %v152 = vunpack.c.h.b16 %v54
  %v153 = vunpack.c.l.b16 %v55
  %v154 = vunpack.c.h.b16 %v55
  %v155 = vunpack.c.l.b16 %v56
  %v156 = vunpack.c.h.b16 %v56
  %v157 = vunpack.c.l.b16 %v57
  %v158 = vunpack.c.h.b16 %v57
  %v159 = vunpack.c.l.b16 %v58
  %v160 = vunpack.c.h.b16 %v58
  %v161 = vunpack.c.l.b16 %v59
  %v162 = vunpack.c.h.b16 %v59
  %v163 = vunpack.c.l.b16 %v60
  %v164 = vunpack.c.h.b16 %v60
  %v165 = vunpack.c.l.b16 %v61
  %v166 = vunpack.c.h.b16 %v61
  %v167 = vunpack.c.l.b16 %v62
  %v168 = vunpack.c.h.b16 %v62
  %v169 = vunpack.c.l.b16 %v63
  %v170 = vunpack.c.h.b16 %v63
  %v171 = vunpack.c.l.b16 %v64
  %v172 = vunpack.c.h.b16 %v64
  %v173 = vunpack.c.l.b16 %v65
  %v174 = vunpack.c.h.b16 %v65
  %v175 = vunpack.c.l.b16 %v66
  %v176 = vunpack.c.h.b16 %v66
  %v177 = vpack.c.b16 %v153, %v145
  %v178 = vpack.c.b16 %v154, %v146
  %v179 = vpack.c.b16 %v155, %v147
  %v180 = vpack.c.b16 %v156, %v148
  %v181 = vpack.c.b16 %v157, %v149
  %v182 = vpack.c.b16 %v158, %v150
  %v183 = vpack.c.b16 %v159, %v151
  %v184 = vpack.c.b16 %v160, %v152
  %v185 = vpack.c.b16 %v169, %v161
  %v186 = vpack.c.b16 %v170, %v162
  %v187 = vpack.c.b16 %v171, %v163
  %v188 = vpack.c.b16 %v172, %v164
  %v189 = vpack.c.b16 %v173, %v165
  %v190 = vpack.c.b16 %v174, %v166
  %v191 = vpack.c.b16 %v175, %v167
  %v192 = vpack.c.b16 %v176, %v168
  %vm209 = vcmask 261120
  %v211 = vsel %vm209, %v125, 0
  %v214 = vsel %vm209, %v126, 0
  %v217 = vsel %vm209, %v127, 0
  %v220 = vsel %vm209, %v128, 0
  %222 = vmatprep.subr.bf16.mxu0 %v178
  %223 = vmatpush1.bf16.msra.mxu0 %v177
  %224 = vmatprep.subr.bf16.mxu0 %v186
  %225 = vmatpush1.bf16.msra.mxu0 %v185
  %226 = vmatprep.subr.bf16.mxu0 0
  %227 = vmatpush1.bf16.msra.mxu0 0
  %228 = vmatprep.subr.bf16.mxu0 0
  %229 = vmatpush1.bf16.msra.mxu0 0
  %230 = vmatprep.subr.bf16.mxu0 0
  %231 = vmatpush1.bf16.msra.mxu0 0
  %232 = vmatprep.subr.bf16.mxu0 0
  %233 = vmatpush1.bf16.msra.mxu0 0
  %234 = vmatprep.subr.bf16.mxu0 0
  %235 = vmatpush1.bf16.msra.mxu0 0
  %236 = vmatprep.subr.bf16.mxu0 0
  %237 = vmatpush1.bf16.msra.mxu0 0
  %238 = vmatprep.subr.bf16.mxu0 0
  %239 = vmatpush1.bf16.msra.mxu0 0
  %240 = vmatprep.subr.bf16.mxu0 0
  %241 = vmatpush1.bf16.msra.mxu0 0
  %242 = vmatprep.subr.bf16.mxu0 0
  %243 = vmatpush1.bf16.msra.mxu0 0
  %244 = vmatprep.subr.bf16.mxu0 0
  %245 = vmatpush1.bf16.msra.mxu0 0
  %246 = vmatprep.subr.bf16.mxu0 0
  %247 = vmatpush1.bf16.msra.mxu0 0
  %248 = vmatprep.subr.bf16.mxu0 0
  %249 = vmatpush1.bf16.msra.mxu0 0
  %250 = vmatprep.subr.bf16.mxu0 0
  %251 = vmatpush1.bf16.msra.mxu0 0
  %252 = vmatprep.subr.bf16.mxu0 0
  %253 = vmatpush1.bf16.msra.mxu0 0
  %254 = vmatprep.mubr.bf16.mxu0 0
  %255 = vmatmul.mubr.bf16.gmra.mrb[0].mxu0 %v211
  %v256 = vpop.f32.mrb[0].mxu0
  %v257 = vadd.f32 %v72, %v256
  %v258 = vpop.f32.mrb[0].mxu0
  %v259 = vadd.f32 %v76, %v258
  %v260 = vpop.f32.mrb[0].mxu0
  %v261 = vadd.f32 %v72, %v260
  %v262 = vpop.f32.mrb[0].mxu0
  %v263 = vadd.f32 %v76, %v262
  %264 = vmatprep.mubr.bf16.mxu0 0
  %265 = vmatmul.mubr.bf16.gmra.mrb[0].mxu0 %v214
  %v266 = vpop.f32.mrb[0].mxu0
  %v267 = vadd.f32 %v72, %v266
  %v268 = vpop.f32.mrb[0].mxu0
  %v269 = vadd.f32 %v76, %v268
  %v270 = vpop.f32.mrb[0].mxu0
  %v271 = vadd.f32 %v72, %v270
  %v272 = vpop.f32.mrb[0].mxu0
  %v273 = vadd.f32 %v76, %v272
  %274 = vmatprep.mubr.bf16.mxu0 0
  %275 = vmatmul.mubr.bf16.gmra.mrb[0].mxu0 %v217
  %v276 = vpop.f32.mrb[0].mxu0
  %v277 = vadd.f32 %v72, %v276
  %v278 = vpop.f32.mrb[0].mxu0
  %v279 = vadd.f32 %v76, %v278
  %v280 = vpop.f32.mrb[0].mxu0
  %v281 = vadd.f32 %v72, %v280
  %v282 = vpop.f32.mrb[0].mxu0
  %v283 = vadd.f32 %v76, %v282
  %284 = vmatprep.mubr.bf16.mxu0 0
  %285 = vmatmul.mubr.bf16.gmra.mrb[0].mxu0 %v220
  %v286 = vpop.f32.mrb[0].mxu0
  %v287 = vadd.f32 %v72, %v286
  %v288 = vpop.f32.mrb[0].mxu0
  %v289 = vadd.f32 %v76, %v288
  %v290 = vpop.f32.mrb[0].mxu0
  %v291 = vadd.f32 %v72, %v290
  %v292 = vpop.f32.mrb[0].mxu0
  %v293 = vadd.f32 %v76, %v292
  %294 = vdwg.mxu0
  %295 = vmatprep.subr.bf16.mxu0 %v180
  %296 = vmatpush1.bf16.msra.mxu0 %v179
  %297 = vmatprep.subr.bf16.mxu0 %v188
  %298 = vmatpush1.bf16.msra.mxu0 %v187
  %299 = vmatprep.subr.bf16.mxu0 0
  %300 = vmatpush1.bf16.msra.mxu0 0
  %301 = vmatprep.subr.bf16.mxu0 0
  %302 = vmatpush1.bf16.msra.mxu0 0
  %303 = vmatprep.subr.bf16.mxu0 0
  %304 = vmatpush1.bf16.msra.mxu0 0
  %305 = vmatprep.subr.bf16.mxu0 0
  %306 = vmatpush1.bf16.msra.mxu0 0
  %307 = vmatprep.subr.bf16.mxu0 0
  %308 = vmatpush1.bf16.msra.mxu0 0
  %309 = vmatprep.subr.bf16.mxu0 0
  %310 = vmatpush1.bf16.msra.mxu0 0
  %311 = vmatprep.subr.bf16.mxu0 0
  %312 = vmatpush1.bf16.msra.mxu0 0
  %313 = vmatprep.subr.bf16.mxu0 0
  %314 = vmatpush1.bf16.msra.mxu0 0
  %315 = vmatprep.subr.bf16.mxu0 0
  %316 = vmatpush1.bf16.msra.mxu0 0
  %317 = vmatprep.subr.bf16.mxu0 0
  %318 = vmatpush1.bf16.msra.mxu0 0
  %319 = vmatprep.subr.bf16.mxu0 0
  %320 = vmatpush1.bf16.msra.mxu0 0
  %321 = vmatprep.subr.bf16.mxu0 0
  %322 = vmatpush1.bf16.msra.mxu0 0
  %323 = vmatprep.subr.bf16.mxu0 0
  %324 = vmatpush1.bf16.msra.mxu0 0
  %325 = vmatprep.subr.bf16.mxu0 0
  %326 = vmatpush1.bf16.msra.mxu0 0
  %327 = vmatprep.mubr.bf16.mxu0 0
  %328 = vmatmul.mubr.bf16.gmra.mrb[0].mxu0 %v211
  %v329 = vpop.f32.mrb[0].mxu0
  %v330 = vadd.f32 %v80, %v329
  %v331 = vpop.f32.mrb[0].mxu0
  %v332 = vadd.f32 %v84, %v331
  %v333 = vpop.f32.mrb[0].mxu0
  %v334 = vadd.f32 %v80, %v333
  %v335 = vpop.f32.mrb[0].mxu0
  %v336 = vadd.f32 %v84, %v335
  %337 = vmatprep.mubr.bf16.mxu0 0
  %338 = vmatmul.mubr.bf16.gmra.mrb[0].mxu0 %v214
  %v339 = vpop.f32.mrb[0].mxu0
  %v340 = vadd.f32 %v80, %v339
  %v341 = vpop.f32.mrb[0].mxu0
  %v342 = vadd.f32 %v84, %v341
  %v343 = vpop.f32.mrb[0].mxu0
  %v344 = vadd.f32 %v80, %v343
  %v345 = vpop.f32.mrb[0].mxu0
  %v346 = vadd.f32 %v84, %v345
  %347 = vmatprep.mubr.bf16.mxu0 0
  %348 = vmatmul.mubr.bf16.gmra.mrb[0].mxu0 %v217
  %v349 = vpop.f32.mrb[0].mxu0
  %v350 = vadd.f32 %v80, %v349
  %v351 = vpop.f32.mrb[0].mxu0
  %v352 = vadd.f32 %v84, %v351
  %v353 = vpop.f32.mrb[0].mxu0
  %v354 = vadd.f32 %v80, %v353
  %v355 = vpop.f32.mrb[0].mxu0
  %v356 = vadd.f32 %v84, %v355
  %357 = vmatprep.mubr.bf16.mxu0 0
  %358 = vmatmul.mubr.bf16.gmra.mrb[0].mxu0 %v220
  %v359 = vpop.f32.mrb[0].mxu0
  %v360 = vadd.f32 %v80, %v359
  %v361 = vpop.f32.mrb[0].mxu0
  %v362 = vadd.f32 %v84, %v361
  %v363 = vpop.f32.mrb[0].mxu0
  %v364 = vadd.f32 %v80, %v363
  %v365 = vpop.f32.mrb[0].mxu0
  %v366 = vadd.f32 %v84, %v365
  %367 = vdwg.mxu0
  %368 = vmatprep.subr.bf16.mxu0 %v182
  %369 = vmatpush1.bf16.msra.mxu0 %v181
  %370 = vmatprep.subr.bf16.mxu0 %v190
  %371 = vmatpush1.bf16.msra.mxu0 %v189
  %372 = vmatprep.subr.bf16.mxu0 0
  %373 = vmatpush1.bf16.msra.mxu0 0
  %374 = vmatprep.subr.bf16.mxu0 0
  %375 = vmatpush1.bf16.msra.mxu0 0
  %376 = vmatprep.subr.bf16.mxu0 0
  %377 = vmatpush1.bf16.msra.mxu0 0
  %378 = vmatprep.subr.bf16.mxu0 0
  %379 = vmatpush1.bf16.msra.mxu0 0
  %380 = vmatprep.subr.bf16.mxu0 0
  %381 = vmatpush1.bf16.msra.mxu0 0
  %382 = vmatprep.subr.bf16.mxu0 0
  %383 = vmatpush1.bf16.msra.mxu0 0
  %384 = vmatprep.subr.bf16.mxu0 0
  %385 = vmatpush1.bf16.msra.mxu0 0
  %386 = vmatprep.subr.bf16.mxu0 0
  %387 = vmatpush1.bf16.msra.mxu0 0
  %388 = vmatprep.subr.bf16.mxu0 0
  %389 = vmatpush1.bf16.msra.mxu0 0
  %390 = vmatprep.subr.bf16.mxu0 0
  %391 = vmatpush1.bf16.msra.mxu0 0
  %392 = vmatprep.subr.bf16.mxu0 0
  %393 = vmatpush1.bf16.msra.mxu0 0
  %394 = vmatprep.subr.bf16.mxu0 0
  %395 = vmatpush1.bf16.msra.mxu0 0
  %396 = vmatprep.subr.bf16.mxu0 0
  %397 = vmatpush1.bf16.msra.mxu0 0
  %398 = vmatprep.subr.bf16.mxu0 0
  %399 = vmatpush1.bf16.msra.mxu0 0
  %400 = vmatprep.mubr.bf16.mxu0 0
  %401 = vmatmul.mubr.bf16.gmra.mrb[0].mxu0 %v211
  %v402 = vpop.f32.mrb[0].mxu0
  %v403 = vadd.f32 %v88, %v402
  %v404 = vpop.f32.mrb[0].mxu0
  %v405 = vadd.f32 %v92, %v404
  %v406 = vpop.f32.mrb[0].mxu0
  %v407 = vadd.f32 %v88, %v406
  %v408 = vpop.f32.mrb[0].mxu0
  %v409 = vadd.f32 %v92, %v408
  %410 = vmatprep.mubr.bf16.mxu0 0
  %411 = vmatmul.mubr.bf16.gmra.mrb[0].mxu0 %v214
  %v412 = vpop.f32.mrb[0].mxu0
  %v413 = vadd.f32 %v88, %v412
  %v414 = vpop.f32.mrb[0].mxu0
  %v415 = vadd.f32 %v92, %v414
  %v416 = vpop.f32.mrb[0].mxu0
  %v417 = vadd.f32 %v88, %v416
  %v418 = vpop.f32.mrb[0].mxu0
  %v419 = vadd.f32 %v92, %v418
  %420 = vmatprep.mubr.bf16.mxu0 0
  %421 = vmatmul.mubr.bf16.gmra.mrb[0].mxu0 %v217
  %v422 = vpop.f32.mrb[0].mxu0
  %v423 = vadd.f32 %v88, %v422
  %v424 = vpop.f32.mrb[0].mxu0
  %v425 = vadd.f32 %v92, %v424
  %v426 = vpop.f32.mrb[0].mxu0
  %v427 = vadd.f32 %v88, %v426
  %v428 = vpop.f32.mrb[0].mxu0
  %v429 = vadd.f32 %v92, %v428
  %430 = vmatprep.mubr.bf16.mxu0 0
  %431 = vmatmul.mubr.bf16.gmra.mrb[0].mxu0 %v220
  %v432 = vpop.f32.mrb[0].mxu0
  %v433 = vadd.f32 %v88, %v432
  %v434 = vpop.f32.mrb[0].mxu0
  %v435 = vadd.f32 %v92, %v434
  %v436 = vpop.f32.mrb[0].mxu0
  %v437 = vadd.f32 %v88, %v436
  %v438 = vpop.f32.mrb[0].mxu0
  %v439 = vadd.f32 %v92, %v438
  %440 = vdwg.mxu0
  %441 = vmatprep.subr.bf16.mxu0 %v184
  %442 = vmatpush1.bf16.msra.mxu0 %v183
  %443 = vmatprep.subr.bf16.mxu0 %v192
  %444 = vmatpush1.bf16.msra.mxu0 %v191
  %445 = vmatprep.subr.bf16.mxu0 0
  %446 = vmatpush1.bf16.msra.mxu0 0
  %447 = vmatprep.subr.bf16.mxu0 0
  %448 = vmatpush1.bf16.msra.mxu0 0
  %449 = vmatprep.subr.bf16.mxu0 0
  %450 = vmatpush1.bf16.msra.mxu0 0
  %451 = vmatprep.subr.bf16.mxu0 0
  %452 = vmatpush1.bf16.msra.mxu0 0
  %453 = vmatprep.subr.bf16.mxu0 0
  %454 = vmatpush1.bf16.msra.mxu0 0
  %455 = vmatprep.subr.bf16.mxu0 0
  %456 = vmatpush1.bf16.msra.mxu0 0
  %457 = vmatprep.subr.bf16.mxu0 0
  %458 = vmatpush1.bf16.msra.mxu0 0
  %459 = vmatprep.subr.bf16.mxu0 0
  %460 = vmatpush1.bf16.msra.mxu0 0
  %461 = vmatprep.subr.bf16.mxu0 0
  %462 = vmatpush1.bf16.msra.mxu0 0
  %463 = vmatprep.subr.bf16.mxu0 0
  %464 = vmatpush1.bf16.msra.mxu0 0
  %465 = vmatprep.subr.bf16.mxu0 0
  %466 = vmatpush1.bf16.msra.mxu0 0
  %467 = vmatprep.subr.bf16.mxu0 0
  %468 = vmatpush1.bf16.msra.mxu0 0
  %469 = vmatprep.subr.bf16.mxu0 0
  %470 = vmatpush1.bf16.msra.mxu0 0
  %471 = vmatprep.subr.bf16.mxu0 0
  %472 = vmatpush1.bf16.msra.mxu0 0
  %473 = vmatprep.mubr.bf16.mxu0 0
  %474 = vmatmul.mubr.bf16.gmra.mrb[0].mxu0 %v211
  %v475 = vpop.f32.mrb[0].mxu0
  %v476 = vadd.f32 %v96, %v475
  %v477 = vpop.f32.mrb[0].mxu0
  %v478 = vadd.f32 %v100, %v477
  %v479 = vpop.f32.mrb[0].mxu0
  %v480 = vadd.f32 %v96, %v479
  %v481 = vpop.f32.mrb[0].mxu0
  %v482 = vadd.f32 %v100, %v481
  %483 = vmatprep.mubr.bf16.mxu0 0
  %484 = vmatmul.mubr.bf16.gmra.mrb[0].mxu0 %v214
  %v485 = vpop.f32.mrb[0].mxu0
  %v486 = vadd.f32 %v96, %v485
  %v487 = vpop.f32.mrb[0].mxu0
  %v488 = vadd.f32 %v100, %v487
  %v489 = vpop.f32.mrb[0].mxu0
  %v490 = vadd.f32 %v96, %v489
  %v491 = vpop.f32.mrb[0].mxu0
  %v492 = vadd.f32 %v100, %v491
  %493 = vmatprep.mubr.bf16.mxu0 0
  %494 = vmatmul.mubr.bf16.gmra.mrb[0].mxu0 %v217
  %v495 = vpop.f32.mrb[0].mxu0
  %v496 = vadd.f32 %v96, %v495
  %v497 = vpop.f32.mrb[0].mxu0
  %v498 = vadd.f32 %v100, %v497
  %v499 = vpop.f32.mrb[0].mxu0
  %v500 = vadd.f32 %v96, %v499
  %v501 = vpop.f32.mrb[0].mxu0
  %v502 = vadd.f32 %v100, %v501
  %503 = vmatprep.mubr.bf16.mxu0 0
  %504 = vmatmul.mubr.bf16.gmra.mrb[0].mxu0 %v220
  %v505 = vpop.f32.mrb[0].mxu0
  %v506 = vadd.f32 %v96, %v505
  %v507 = vpop.f32.mrb[0].mxu0
  %v508 = vadd.f32 %v100, %v507
  %v509 = vpop.f32.mrb[0].mxu0
  %v510 = vadd.f32 %v96, %v509
  %v511 = vpop.f32.mrb[0].mxu0
  %v512 = vadd.f32 %v100, %v511
  %513 = vdwg.mxu0
  %514 = vst [vmem:[#allocation2] sm:$0xff] %v257
  %515 = vst [vmem:[#allocation2 + $0x8] sm:$0xff] %v259
  %516 = vst [vmem:[#allocation2 + $0x10] sm:$0xff] %v330
  %517 = vst [vmem:[#allocation2 + $0x18] sm:$0xff] %v332
  %518 = vst [vmem:[#allocation2 + $0x20] sm:$0xff] %v403
  %519 = vst [vmem:[#allocation2 + $0x28] sm:$0xff] %v405
  %520 = vst [vmem:[#allocation2 + $0x30] sm:$0xff] %v476
  %521 = vst [vmem:[#allocation2 + $0x38] sm:$0xff] %v478
  %522 = vst [vmem:[#allocation2 + $0x40] sm:$0xff] %v261
  %523 = vst [vmem:[#allocation2 + $0x48] sm:$0xff] %v263
  %524 = vst [vmem:[#allocation2 + $0x50] sm:$0xff] %v334
  %525 = vst [vmem:[#allocation2 + $0x58] sm:$0xff] %v336
  %526 = vst [vmem:[#allocation2 + $0x60] sm:$0xff] %v407
  %527 = vst [vmem:[#allocation2 + $0x68] sm:$0xff] %v409
  %528 = vst [vmem:[#allocation2 + $0x70] sm:$0xff] %v480
  %529 = vst [vmem:[#allocation2 + $0x78] sm:$0xff] %v482
  %530 = vst [vmem:[#allocation2 + $0x80] sm:$0xff] %v267
  %531 = vst [vmem:[#allocation2 + $0x88] sm:$0xff] %v269
  %532 = vst [vmem:[#allocation2 + $0x90] sm:$0xff] %v340
  %533 = vst [vmem:[#allocation2 + $0x98] sm:$0xff] %v342
  %534 = vst [vmem:[#allocation2 + $0xa0] sm:$0xff] %v413
  %535 = vst [vmem:[#allocation2 + $0xa8] sm:$0xff] %v415
  %536 = vst [vmem:[#allocation2 + $0xb0] sm:$0xff] %v486
  %537 = vst [vmem:[#allocation2 + $0xb8] sm:$0xff] %v488
  %538 = vst [vmem:[#allocation2 + $0xc0] sm:$0xff] %v271
  %539 = vst [vmem:[#allocation2 + $0xc8] sm:$0xff] %v273
  %540 = vst [vmem:[#allocation2 + $0xd0] sm:$0xff] %v344
  %541 = vst [vmem:[#allocation2 + $0xd8] sm:$0xff] %v346
  %542 = vst [vmem:[#allocation2 + $0xe0] sm:$0xff] %v417
  %543 = vst [vmem:[#allocation2 + $0xe8] sm:$0xff] %v419
  %544 = vst [vmem:[#allocation2 + $0xf0] sm:$0xff] %v490
  %545 = vst [vmem:[#allocation2 + $0xf8] sm:$0xff] %v492
  %546 = vst [vmem:[#allocation2 + $0x100] sm:$0xff] %v277
  %547 = vst [vmem:[#allocation2 + $0x108] sm:$0xff] %v279
  %548 = vst [vmem:[#allocation2 + $0x110] sm:$0xff] %v350
  %549 = vst [vmem:[#allocation2 + $0x118] sm:$0xff] %v352
  %550 = vst [vmem:[#allocation2 + $0x120] sm:$0xff] %v423
  %551 = vst [vmem:[#allocation2 + $0x128] sm:$0xff] %v425
  %552 = vst [vmem:[#allocation2 + $0x130] sm:$0xff] %v496
  %553 = vst [vmem:[#allocation2 + $0x138] sm:$0xff] %v498
  %554 = vst [vmem:[#allocation2 + $0x140] sm:$0xff] %v281
  %555 = vst [vmem:[#allocation2 + $0x148] sm:$0xff] %v283
  %556 = vst [vmem:[#allocation2 + $0x150] sm:$0xff] %v354
  %557 = vst [vmem:[#allocation2 + $0x158] sm:$0xff] %v356
  %558 = vst [vmem:[#allocation2 + $0x160] sm:$0xff] %v427
  %559 = vst [vmem:[#allocation2 + $0x168] sm:$0xff] %v429
  %560 = vst [vmem:[#allocation2 + $0x170] sm:$0xff] %v500
  %561 = vst [vmem:[#allocation2 + $0x178] sm:$0xff] %v502
  %562 = vst [vmem:[#allocation2 + $0x180] sm:$0xff] %v287
  %563 = vst [vmem:[#allocation2 + $0x188] sm:$0xff] %v289
  %564 = vst [vmem:[#allocation2 + $0x190] sm:$0xff] %v360
  %565 = vst [vmem:[#allocation2 + $0x198] sm:$0xff] %v362
  %566 = vst [vmem:[#allocation2 + $0x1a0] sm:$0xff] %v433
  %567 = vst [vmem:[#allocation2 + $0x1a8] sm:$0xff] %v435
  %568 = vst [vmem:[#allocation2 + $0x1b0] sm:$0xff] %v506
  %569 = vst [vmem:[#allocation2 + $0x1b8] sm:$0xff] %v508
  %570 = vst [vmem:[#allocation2 + $0x1c0] sm:$0xff] %v291
  %571 = vst [vmem:[#allocation2 + $0x1c8] sm:$0xff] %v293
  %572 = vst [vmem:[#allocation2 + $0x1d0] sm:$0xff] %v364
  %573 = vst [vmem:[#allocation2 + $0x1d8] sm:$0xff] %v366
  %574 = vst [vmem:[#allocation2 + $0x1e0] sm:$0xff] %v437
  %575 = vst [vmem:[#allocation2 + $0x1e8] sm:$0xff] %v439
  %576 = vst [vmem:[#allocation2 + $0x1f0] sm:$0xff] %v510
  %577 = vst [vmem:[#allocation2 + $0x1f8] sm:$0xff] %v512
  %v578 = vld [vmem:[%s2] sm:$0xff]
  %v579 = vld [vmem:[%s4] sm:$0xff]
  %v580 = vld [vmem:[%s4 + $0x8] sm:$0xff]
  %v581 = vld [vmem:[%s4 + $0x10] sm:$0xff]
  %v582 = vld [vmem:[%s4 + $0x18] sm:$0xff]
  %v583 = vld [vmem:[%s4 + $0x20] sm:$0xff]
  %v584 = vld [vmem:[%s4 + $0x28] sm:$0xff]
  %v585 = vld [vmem:[%s4 + $0x30] sm:$0xff]
  %v586 = vld [vmem:[%s4 + $0x38] sm:$0xff]
  %v587 = vld [vmem:[%s4 + $0x40] sm:$0xff]
  %v588 = vld [vmem:[%s4 + $0x48] sm:$0xff]
  %v589 = vld [vmem:[%s4 + $0x50] sm:$0xff]
  %v590 = vld [vmem:[%s4 + $0x58] sm:$0xff]
  %v591 = vld [vmem:[%s4 + $0x60] sm:$0xff]
  %v592 = vld [vmem:[%s4 + $0x68] sm:$0xff]
  %v593 = vld [vmem:[%s4 + $0x70] sm:$0xff]
  %v594 = vld [vmem:[%s4 + $0x78] sm:$0xff]
  %v595 = vld [vmem:[%s4 + $0x80] sm:$0xff]
  %v596 = vld [vmem:[%s4 + $0x88] sm:$0xff]
  %v597 = vld [vmem:[%s4 + $0x90] sm:$0xff]
  %v598 = vld [vmem:[%s4 + $0x98] sm:$0xff]
  %v599 = vld [vmem:[%s4 + $0xa0] sm:$0xff]
  %v600 = vld [vmem:[%s4 + $0xa8] sm:$0xff]
  %v601 = vld [vmem:[%s4 + $0xb0] sm:$0xff]
  %v602 = vld [vmem:[%s4 + $0xb8] sm:$0xff]
  %v603 = vld [vmem:[%s4 + $0xc0] sm:$0xff]
  %v604 = vld [vmem:[%s4 + $0xc8] sm:$0xff]
  %v605 = vld [vmem:[%s4 + $0xd0] sm:$0xff]
  %v606 = vld [vmem:[%s4 + $0xd8] sm:$0xff]
  %v607 = vld [vmem:[%s4 + $0xe0] sm:$0xff]
  %v608 = vld [vmem:[%s4 + $0xe8] sm:$0xff]
  %v609 = vld [vmem:[%s4 + $0xf0] sm:$0xff]
  %v610 = vld [vmem:[%s4 + $0xf8] sm:$0xff]
  %v611 = vld [vmem:[%s4 + $0x100] sm:$0xff]
  %v612 = vld [vmem:[%s4 + $0x108] sm:$0xff]
  %v613 = vld [vmem:[%s4 + $0x110] sm:$0xff]
  %v614 = vld [vmem:[%s4 + $0x118] sm:$0xff]
  %v615 = vld [vmem:[%s4 + $0x120] sm:$0xff]
  %v616 = vld [vmem:[%s4 + $0x128] sm:$0xff]
  %v617 = vld [vmem:[%s4 + $0x130] sm:$0xff]
  %v618 = vld [vmem:[%s4 + $0x138] sm:$0xff]
  %v619 = vld [vmem:[%s4 + $0x140] sm:$0xff]
  %v620 = vld [vmem:[%s4 + $0x148] sm:$0xff]
  %v621 = vld [vmem:[%s4 + $0x150] sm:$0xff]
  %v622 = vld [vmem:[%s4 + $0x158] sm:$0xff]
  %v623 = vld [vmem:[%s4 + $0x160] sm:$0xff]
  %v624 = vld [vmem:[%s4 + $0x168] sm:$0xff]
  %v625 = vld [vmem:[%s4 + $0x170] sm:$0xff]
  %v626 = vld [vmem:[%s4 + $0x178] sm:$0xff]
  %v627 = vld [vmem:[%s4 + $0x180] sm:$0xff]
  %v628 = vld [vmem:[%s4 + $0x188] sm:$0xff]
  %v629 = vld [vmem:[%s4 + $0x190] sm:$0xff]
  %v630 = vld [vmem:[%s4 + $0x198] sm:$0xff]
  %v631 = vld [vmem:[%s4 + $0x1a0] sm:$0xff]
  %v632 = vld [vmem:[%s4 + $0x1a8] sm:$0xff]
  %v633 = vld [vmem:[%s4 + $0x1b0] sm:$0xff]
  %v634 = vld [vmem:[%s4 + $0x1b8] sm:$0xff]
  %v635 = vld [vmem:[%s4 + $0x1c0] sm:$0xff]
  %v636 = vld [vmem:[%s4 + $0x1c8] sm:$0xff]
  %v637 = vld [vmem:[%s4 + $0x1d0] sm:$0xff]
  %v638 = vld [vmem:[%s4 + $0x1d8] sm:$0xff]
  %v639 = vld [vmem:[%s4 + $0x1e0] sm:$0xff]
  %v640 = vld [vmem:[%s4 + $0x1e8] sm:$0xff]
  %v641 = vld [vmem:[%s4 + $0x1f0] sm:$0xff]
  %v642 = vld [vmem:[%s4 + $0x1f8] sm:$0xff]
  %v643 = vld [vmem:[%s4 + $0x200] sm:$0xff]
  %v644 = vld [vmem:[%s4 + $0x208] sm:$0xff]
  %v645 = vld [vmem:[%s4 + $0x210] sm:$0xff]
  %v646 = vld [vmem:[%s4 + $0x218] sm:$0xff]
  %v647 = vld [vmem:[%s4 + $0x220] sm:$0xff]
  %v648 = vld [vmem:[%s4 + $0x228] sm:$0xff]
  %v649 = vld [vmem:[%s4 + $0x230] sm:$0xff]
  %v650 = vld [vmem:[%s4 + $0x238] sm:$0xff]
  %v651 = vld [vmem:[%s4 + $0x240] sm:$0xff]
  %v652 = vld [vmem:[%s4 + $0x248] sm:$0xff]
  %v653 = vld [vmem:[%s4 + $0x250] sm:$0xff]
  %v654 = vld [vmem:[%s4 + $0x258] sm:$0xff]
  %v655 = vld [vmem:[%s4 + $0x260] sm:$0xff]
  %v656 = vld [vmem:[%s4 + $0x268] sm:$0xff]
  %v657 = vld [vmem:[%s4 + $0x270] sm:$0xff]
  %v658 = vld [vmem:[%s4 + $0x278] sm:$0xff]
  %v659 = vld [vmem:[%s4 + $0x280] sm:$0xff]
  %v660 = vld [vmem:[%s4 + $0x288] sm:$0xff]
  %v661 = vld [vmem:[%s4 + $0x290] sm:$0xff]
  %v662 = vld [vmem:[%s4 + $0x298] sm:$0xff]
  %v663 = vld [vmem:[%s4 + $0x2a0] sm:$0xff]
  %v664 = vld [vmem:[%s4 + $0x2a8] sm:$0xff]
  %v665 = vld [vmem:[%s4 + $0x2b0] sm:$0xff]
  %v666 = vld [vmem:[%s4 + $0x2b8] sm:$0xff]
  %v667 = vld [vmem:[%s4 + $0x2c0] sm:$0xff]
  %v668 = vld [vmem:[%s4 + $0x2c8] sm:$0xff]
  %v669 = vld [vmem:[%s4 + $0x2d0] sm:$0xff]
  %v670 = vld [vmem:[%s4 + $0x2d8] sm:$0xff]
  %v671 = vld [vmem:[%s4 + $0x2e0] sm:$0xff]
  %v672 = vld [vmem:[%s4 + $0x2e8] sm:$0xff]
  %v673 = vld [vmem:[%s4 + $0x2f0] sm:$0xff]
  %v674 = vld [vmem:[%s4 + $0x2f8] sm:$0xff]
  %v675 = vld [vmem:[%s4 + $0x300] sm:$0xff]
  %v676 = vld [vmem:[%s4 + $0x308] sm:$0xff]
  %v677 = vld [vmem:[%s4 + $0x310] sm:$0xff]
  %v678 = vld [vmem:[%s4 + $0x318] sm:$0xff]
  %v679 = vld [vmem:[%s4 + $0x320] sm:$0xff]
  %v680 = vld [vmem:[%s4 + $0x328] sm:$0xff]
  %v681 = vld [vmem:[%s4 + $0x330] sm:$0xff]
  %v682 = vld [vmem:[%s4 + $0x338] sm:$0xff]
  %v683 = vld [vmem:[%s4 + $0x340] sm:$0xff]
  %v684 = vld [vmem:[%s4 + $0x348] sm:$0xff]
  %v685 = vld [vmem:[%s4 + $0x350] sm:$0xff]
  %v686 = vld [vmem:[%s4 + $0x358] sm:$0xff]
  %v687 = vld [vmem:[%s4 + $0x360] sm:$0xff]
  %v688 = vld [vmem:[%s4 + $0x368] sm:$0xff]
  %v689 = vld [vmem:[%s4 + $0x370] sm:$0xff]
  %v690 = vld [vmem:[%s4 + $0x378] sm:$0xff]
  %v691 = vld [vmem:[%s4 + $0x380] sm:$0xff]
  %v692 = vld [vmem:[%s4 + $0x388] sm:$0xff]
  %v693 = vld [vmem:[%s4 + $0x390] sm:$0xff]
  %v694 = vld [vmem:[%s4 + $0x398] sm:$0xff]
  %v695 = vld [vmem:[%s4 + $0x3a0] sm:$0xff]
  %v696 = vld [vmem:[%s4 + $0x3a8] sm:$0xff]
  %v697 = vld [vmem:[%s4 + $0x3b0] sm:$0xff]
  %v698 = vld [vmem:[%s4 + $0x3b8] sm:$0xff]
  %v699 = vld [vmem:[%s4 + $0x3c0] sm:$0xff]
  %v700 = vld [vmem:[%s4 + $0x3c8] sm:$0xff]
  %v701 = vld [vmem:[%s4 + $0x3d0] sm:$0xff]
  %v702 = vld [vmem:[%s4 + $0x3d8] sm:$0xff]
  %v703 = vld [vmem:[%s4 + $0x3e0] sm:$0xff]
  %v704 = vld [vmem:[%s4 + $0x3e8] sm:$0xff]
  %v705 = vld [vmem:[%s4 + $0x3f0] sm:$0xff]
  %v706 = vld [vmem:[%s4 + $0x3f8] sm:$0xff]
  %s707 = sld [smem:[#allocation4]]
  // While loop
  $region38: #{ro_inflect_forward.1} parent=0 // loop_pre_header
    _
  $region39: #{ro_inflect_forward.1} parent=0 // loop_header
    %s709 = sphi 0, %s711
    %p710 = scmp.ge.s32.totalorder %s709, %s707
    %v714 = vphi 0.0, %v1590
    %v715 = vphi 0.0, %v1591
    %v716 = vphi 0.0, %v1592
    %v717 = vphi 0.0, %v1593
  $region40: #{ro_inflect_forward.1} parent=0 // loop_header_branch
    %713 = sbr.rel (%p710) target = $region44
  $region41: #{ro_inflect_forward.1} parent=0 // loop_body
    %v718 = vpack.c.bf16 %v714, %v714
    %v719 = vpack.c.bf16 %v715, %v715
    %s720 = smul.u32 %s709, 8
    %s721 = smul.addr %s720, 8
    %s722 = scalar_lea.vmem [#allocation2], %s721
    %v723 = vld [vmem:[%s722] sm:$0xff]
    %v724 = vld [vmem:[%s722 + $0x8] sm:$0xff]
    %v725 = vld [vmem:[%s722 + $0x10] sm:$0xff]
    %v726 = vld [vmem:[%s722 + $0x18] sm:$0xff]
    %v727 = vld [vmem:[%s722 + $0x20] sm:$0xff]
    %v728 = vld [vmem:[%s722 + $0x28] sm:$0xff]
    %v729 = vld [vmem:[%s722 + $0x30] sm:$0xff]
    %v730 = vld [vmem:[%s722 + $0x38] sm:$0xff]
    %v859 = vunpack.c.l.b16 %v579
    %v860 = vunpack.c.h.b16 %v579
    %v861 = vunpack.c.l.b16 %v580
    %v862 = vunpack.c.h.b16 %v580
    %v863 = vunpack.c.l.b16 %v581
    %v864 = vunpack.c.h.b16 %v581
    %v865 = vunpack.c.l.b16 %v582
    %v866 = vunpack.c.h.b16 %v582
    %v867 = vunpack.c.l.b16 %v583
    %v868 = vunpack.c.h.b16 %v583
    %v869 = vunpack.c.l.b16 %v584
    %v870 = vunpack.c.h.b16 %v584
    %v871 = vunpack.c.l.b16 %v585
    %v872 = vunpack.c.h.b16 %v585
    %v873 = vunpack.c.l.b16 %v586
    %v874 = vunpack.c.h.b16 %v586
    %v875 = vunpack.c.l.b16 %v587
    %v876 = vunpack.c.h.b16 %v587
    %v877 = vunpack.c.l.b16 %v588
    %v878 = vunpack.c.h.b16 %v588
    %v879 = vunpack.c.l.b16 %v589
    %v880 = vunpack.c.h.b16 %v589
    %v881 = vunpack.c.l.b16 %v590
    %v882 = vunpack.c.h.b16 %v590
    %v883 = vunpack.c.l.b16 %v591
    %v884 = vunpack.c.h.b16 %v591
    %v885 = vunpack.c.l.b16 %v592
    %v886 = vunpack.c.h.b16 %v592
    %v887 = vunpack.c.l.b16 %v593
    %v888 = vunpack.c.h.b16 %v593
    %v889 = vunpack.c.l.b16 %v594
    %v890 = vunpack.c.h.b16 %v594
    %v891 = vunpack.c.l.b16 %v595
    %v892 = vunpack.c.h.b16 %v595
    %v893 = vunpack.c.l.b16 %v596
    %v894 = vunpack.c.h.b16 %v596
    %v895 = vunpack.c.l.b16 %v597
    %v896 = vunpack.c.h.b16 %v597
    %v897 = vunpack.c.l.b16 %v598
    %v898 = vunpack.c.h.b16 %v598
    %v899 = vunpack.c.l.b16 %v599
    %v900 = vunpack.c.h.b16 %v599
    %v901 = vunpack.c.l.b16 %v600
    %v902 = vunpack.c.h.b16 %v600
    %v903 = vunpack.c.l.b16 %v601
    %v904 = vunpack.c.h.b16 %v601
    %v905 = vunpack.c.l.b16 %v602
    %v906 = vunpack.c.h.b16 %v602
    %v907 = vunpack.c.l.b16 %v603
    %v908 = vunpack.c.h.b16 %v603
    %v909 = vunpack.c.l.b16 %v604
    %v910 = vunpack.c.h.b16 %v604
    %v911 = vunpack.c.l.b16 %v605
    %v912 = vunpack.c.h.b16 %v605
    %v913 = vunpack.c.l.b16 %v606
    %v914 = vunpack.c.h.b16 %v606
    %v915 = vunpack.c.l.b16 %v607
    %v916 = vunpack.c.h.b16 %v607
    %v917 = vunpack.c.l.b16 %v608
    %v918 = vunpack.c.h.b16 %v608
    %v919 = vunpack.c.l.b16 %v609
    %v920 = vunpack.c.h.b16 %v609
    %v921 = vunpack.c.l.b16 %v610
    %v922 = vunpack.c.h.b16 %v610
    %v923 = vunpack.c.l.b16 %v611
    %v924 = vunpack.c.h.b16 %v611
    %v925 = vunpack.c.l.b16 %v612
    %v926 = vunpack.c.h.b16 %v612
    %v927 = vunpack.c.l.b16 %v613
    %v928 = vunpack.c.h.b16 %v613
    %v929 = vunpack.c.l.b16 %v614
    %v930 = vunpack.c.h.b16 %v614
    %v931 = vunpack.c.l.b16 %v615
    %v932 = vunpack.c.h.b16 %v615
    %v933 = vunpack.c.l.b16 %v616
    %v934 = vunpack.c.h.b16 %v616
    %v935 = vunpack.c.l.b16 %v617
    %v936 = vunpack.c.h.b16 %v617
    %v937 = vunpack.c.l.b16 %v618
    %v938 = vunpack.c.h.b16 %v618
    %v939 = vunpack.c.l.b16 %v619
    %v940 = vunpack.c.h.b16 %v619
    %v941 = vunpack.c.l.b16 %v620
    %v942 = vunpack.c.h.b16 %v620
    %v943 = vunpack.c.l.b16 %v621
    %v944 = vunpack.c.h.b16 %v621
    %v945 = vunpack.c.l.b16 %v622
    %v946 = vunpack.c.h.b16 %v622
    %v947 = vunpack.c.l.b16 %v623
    %v948 = vunpack.c.h.b16 %v623
    %v949 = vunpack.c.l.b16 %v624
    %v950 = vunpack.c.h.b16 %v624
    %v951 = vunpack.c.l.b16 %v625
    %v952 = vunpack.c.h.b16 %v625
    %v953 = vunpack.c.l.b16 %v626
    %v954 = vunpack.c.h.b16 %v626
    %v955 = vunpack.c.l.b16 %v627
    %v956 = vunpack.c.h.b16 %v627
    %v957 = vunpack.c.l.b16 %v628
    %v958 = vunpack.c.h.b16 %v628
    %v959 = vunpack.c.l.b16 %v629
    %v960 = vunpack.c.h.b16 %v629
    %v961 = vunpack.c.l.b16 %v630
    %v962 = vunpack.c.h.b16 %v630
    %v963 = vunpack.c.l.b16 %v631
    %v964 = vunpack.c.h.b16 %v631
    %v965 = vunpack.c.l.b16 %v632
    %v966 = vunpack.c.h.b16 %v632
    %v967 = vunpack.c.l.b16 %v633
    %v968 = vunpack.c.h.b16 %v633
    %v969 = vunpack.c.l.b16 %v634
    %v970 = vunpack.c.h.b16 %v634
    %v971 = vunpack.c.l.b16 %v635
    %v972 = vunpack.c.h.b16 %v635
    %v973 = vunpack.c.l.b16 %v636
    %v974 = vunpack.c.h.b16 %v636
    %v975 = vunpack.c.l.b16 %v637
    %v976 = vunpack.c.h.b16 %v637
    %v977 = vunpack.c.l.b16 %v638
    %v978 = vunpack.c.h.b16 %v638
    %v979 = vunpack.c.l.b16 %v639
    %v980 = vunpack.c.h.b16 %v639
    %v981 = vunpack.c.l.b16 %v640
    %v982 = vunpack.c.h.b16 %v640
    %v983 = vunpack.c.l.b16 %v641
    %v984 = vunpack.c.h.b16 %v641
    %v985 = vunpack.c.l.b16 %v642
    %v986 = vunpack.c.h.b16 %v642
    %v987 = vunpack.c.l.b16 %v643
    %v988 = vunpack.c.h.b16 %v643
    %v989 = vunpack.c.l.b16 %v644
    %v990 = vunpack.c.h.b16 %v644
    %v991 = vunpack.c.l.b16 %v645
    %v992 = vunpack.c.h.b16 %v645
    %v993 = vunpack.c.l.b16 %v646
    %v994 = vunpack.c.h.b16 %v646
    %v995 = vunpack.c.l.b16 %v647
    %v996 = vunpack.c.h.b16 %v647
    %v997 = vunpack.c.l.b16 %v648
    %v998 = vunpack.c.h.b16 %v648
    %v999 = vunpack.c.l.b16 %v649
    %v1000 = vunpack.c.h.b16 %v649
    %v1001 = vunpack.c.l.b16 %v650
    %v1002 = vunpack.c.h.b16 %v650
    %v1003 = vunpack.c.l.b16 %v651
    %v1004 = vunpack.c.h.b16 %v651
    %v1005 = vunpack.c.l.b16 %v652
    %v1006 = vunpack.c.h.b16 %v652
    %v1007 = vunpack.c.l.b16 %v653
    %v1008 = vunpack.c.h.b16 %v653
    %v1009 = vunpack.c.l.b16 %v654
    %v1010 = vunpack.c.h.b16 %v654
    %v1011 = vunpack.c.l.b16 %v655
    %v1012 = vunpack.c.h.b16 %v655
    %v1013 = vunpack.c.l.b16 %v656
    %v1014 = vunpack.c.h.b16 %v656
    %v1015 = vunpack.c.l.b16 %v657
    %v1016 = vunpack.c.h.b16 %v657
    %v1017 = vunpack.c.l.b16 %v658
    %v1018 = vunpack.c.h.b16 %v658
    %v1019 = vunpack.c.l.b16 %v659
    %v1020 = vunpack.c.h.b16 %v659
    %v1021 = vunpack.c.l.b16 %v660
    %v1022 = vunpack.c.h.b16 %v660
    %v1023 = vunpack.c.l.b16 %v661
    %v1024 = vunpack.c.h.b16 %v661
    %v1025 = vunpack.c.l.b16 %v662
    %v1026 = vunpack.c.h.b16 %v662
    %v1027 = vunpack.c.l.b16 %v663
    %v1028 = vunpack.c.h.b16 %v663
    %v1029 = vunpack.c.l.b16 %v664
    %v1030 = vunpack.c.h.b16 %v664
    %v1031 = vunpack.c.l.b16 %v665
    %v1032 = vunpack.c.h.b16 %v665
    %v1033 = vunpack.c.l.b16 %v666
    %v1034 = vunpack.c.h.b16 %v666
    %v1035 = vunpack.c.l.b16 %v667
    %v1036 = vunpack.c.h.b16 %v667
    %v1037 = vunpack.c.l.b16 %v668
    %v1038 = vunpack.c.h.b16 %v668
    %v1039 = vunpack.c.l.b16 %v669
    %v1040 = vunpack.c.h.b16 %v669
    %v1041 = vunpack.c.l.b16 %v670
    %v1042 = vunpack.c.h.b16 %v670
    %v1043 = vunpack.c.l.b16 %v671
    %v1044 = vunpack.c.h.b16 %v671
    %v1045 = vunpack.c.l.b16 %v672
    %v1046 = vunpack.c.h.b16 %v672
    %v1047 = vunpack.c.l.b16 %v673
    %v1048 = vunpack.c.h.b16 %v673
    %v1049 = vunpack.c.l.b16 %v674
    %v1050 = vunpack.c.h.b16 %v674
    %v1051 = vunpack.c.l.b16 %v675
    %v1052 = vunpack.c.h.b16 %v675
    %v1053 = vunpack.c.l.b16 %v676
    %v1054 = vunpack.c.h.b16 %v676
    %v1055 = vunpack.c.l.b16 %v677
    %v1056 = vunpack.c.h.b16 %v677
    %v1057 = vunpack.c.l.b16 %v678
    %v1058 = vunpack.c.h.b16 %v678
    %v1059 = vunpack.c.l.b16 %v679
    %v1060 = vunpack.c.h.b16 %v679
    %v1061 = vunpack.c.l.b16 %v680
    %v1062 = vunpack.c.h.b16 %v680
    %v1063 = vunpack.c.l.b16 %v681
    %v1064 = vunpack.c.h.b16 %v681
    %v1065 = vunpack.c.l.b16 %v682
    %v1066 = vunpack.c.h.b16 %v682
    %v1067 = vunpack.c.l.b16 %v683
    %v1068 = vunpack.c.h.b16 %v683
    %v1069 = vunpack.c.l.b16 %v684
    %v1070 = vunpack.c.h.b16 %v684
    %v1071 = vunpack.c.l.b16 %v685
    %v1072 = vunpack.c.h.b16 %v685
    %v1073 = vunpack.c.l.b16 %v686
    %v1074 = vunpack.c.h.b16 %v686
    %v1075 = vunpack.c.l.b16 %v687
    %v1076 = vunpack.c.h.b16 %v687
    %v1077 = vunpack.c.l.b16 %v688
    %v1078 = vunpack.c.h.b16 %v688
    %v1079 = vunpack.c.l.b16 %v689
    %v1080 = vunpack.c.h.b16 %v689
    %v1081 = vunpack.c.l.b16 %v690
    %v1082 = vunpack.c.h.b16 %v690
    %v1083 = vunpack.c.l.b16 %v691
    %v1084 = vunpack.c.h.b16 %v691
    %v1085 = vunpack.c.l.b16 %v692
    %v1086 = vunpack.c.h.b16 %v692
    %v1087 = vunpack.c.l.b16 %v693
    %v1088 = vunpack.c.h.b16 %v693
    %v1089 = vunpack.c.l.b16 %v694
    %v1090 = vunpack.c.h.b16 %v694
    %v1091 = vunpack.c.l.b16 %v695
    %v1092 = vunpack.c.h.b16 %v695
    %v1093 = vunpack.c.l.b16 %v696
    %v1094 = vunpack.c.h.b16 %v696
    %v1095 = vunpack.c.l.b16 %v697
    %v1096 = vunpack.c.h.b16 %v697
    %v1097 = vunpack.c.l.b16 %v698
    %v1098 = vunpack.c.h.b16 %v698
    %v1099 = vunpack.c.l.b16 %v699
    %v1100 = vunpack.c.h.b16 %v699
    %v1101 = vunpack.c.l.b16 %v700
    %v1102 = vunpack.c.h.b16 %v700
    %v1103 = vunpack.c.l.b16 %v701
    %v1104 = vunpack.c.h.b16 %v701
    %v1105 = vunpack.c.l.b16 %v702
    %v1106 = vunpack.c.h.b16 %v702
    %v1107 = vunpack.c.l.b16 %v703
    %v1108 = vunpack.c.h.b16 %v703
    %v1109 = vunpack.c.l.b16 %v704
    %v1110 = vunpack.c.h.b16 %v704
    %v1111 = vunpack.c.l.b16 %v705
    %v1112 = vunpack.c.h.b16 %v705
    %v1113 = vunpack.c.l.b16 %v706
    %v1114 = vunpack.c.h.b16 %v706
    %v1115 = vpack.c.b16 %v867, %v859
    %v1116 = vpack.c.b16 %v868, %v860
    %v1117 = vpack.c.b16 %v869, %v861
    %v1118 = vpack.c.b16 %v870, %v862
    %v1119 = vpack.c.b16 %v871, %v863
    %v1120 = vpack.c.b16 %v872, %v864
    %v1121 = vpack.c.b16 %v873, %v865
    %v1122 = vpack.c.b16 %v874, %v866
    %v1123 = vpack.c.b16 %v883, %v875
    %v1124 = vpack.c.b16 %v884, %v876
    %v1125 = vpack.c.b16 %v885, %v877
    %v1126 = vpack.c.b16 %v886, %v878
    %v1127 = vpack.c.b16 %v887, %v879
    %v1128 = vpack.c.b16 %v888, %v880
    %v1129 = vpack.c.b16 %v889, %v881
    %v1130 = vpack.c.b16 %v890, %v882
    %v1131 = vpack.c.b16 %v899, %v891
    %v1132 = vpack.c.b16 %v900, %v892
    %v1133 = vpack.c.b16 %v901, %v893
    %v1134 = vpack.c.b16 %v902, %v894
    %v1135 = vpack.c.b16 %v903, %v895
    %v1136 = vpack.c.b16 %v904, %v896
    %v1137 = vpack.c.b16 %v905, %v897
    %v1138 = vpack.c.b16 %v906, %v898
    %v1139 = vpack.c.b16 %v915, %v907
    %v1140 = vpack.c.b16 %v916, %v908
    %v1141 = vpack.c.b16 %v917, %v909
    %v1142 = vpack.c.b16 %v918, %v910
    %v1143 = vpack.c.b16 %v919, %v911
    %v1144 = vpack.c.b16 %v920, %v912
    %v1145 = vpack.c.b16 %v921, %v913
    %v1146 = vpack.c.b16 %v922, %v914
    %v1147 = vpack.c.b16 %v931, %v923
    %v1148 = vpack.c.b16 %v932, %v924
    %v1149 = vpack.c.b16 %v933, %v925
    %v1150 = vpack.c.b16 %v934, %v926
    %v1151 = vpack.c.b16 %v935, %v927
    %v1152 = vpack.c.b16 %v936, %v928
    %v1153 = vpack.c.b16 %v937, %v929
    %v1154 = vpack.c.b16 %v938, %v930
    %v1155 = vpack.c.b16 %v947, %v939
    %v1156 = vpack.c.b16 %v948, %v940
    %v1157 = vpack.c.b16 %v949, %v941
    %v1158 = vpack.c.b16 %v950, %v942
    %v1159 = vpack.c.b16 %v951, %v943
    %v1160 = vpack.c.b16 %v952, %v944
    %v1161 = vpack.c.b16 %v953, %v945
    %v1162 = vpack.c.b16 %v954, %v946
    %v1163 = vpack.c.b16 %v963, %v955
    %v1164 = vpack.c.b16 %v964, %v956
    %v1165 = vpack.c.b16 %v965, %v957
    %v1166 = vpack.c.b16 %v966, %v958
    %v1167 = vpack.c.b16 %v967, %v959
    %v1168 = vpack.c.b16 %v968, %v960
    %v1169 = vpack.c.b16 %v969, %v961
    %v1170 = vpack.c.b16 %v970, %v962
    %v1171 = vpack.c.b16 %v979, %v971
    %v1172 = vpack.c.b16 %v980, %v972
    %v1173 = vpack.c.b16 %v981, %v973
    %v1174 = vpack.c.b16 %v982, %v974
    %v1175 = vpack.c.b16 %v983, %v975
    %v1176 = vpack.c.b16 %v984, %v976
    %v1177 = vpack.c.b16 %v985, %v977
    %v1178 = vpack.c.b16 %v986, %v978
    %v1179 = vpack.c.b16 %v995, %v987
    %v1180 = vpack.c.b16 %v996, %v988
    %v1181 = vpack.c.b16 %v997, %v989
    %v1182 = vpack.c.b16 %v998, %v990
    %v1183 = vpack.c.b16 %v999, %v991
    %v1184 = vpack.c.b16 %v1000, %v992
    %v1185 = vpack.c.b16 %v1001, %v993
    %v1186 = vpack.c.b16 %v1002, %v994
    %v1187 = vpack.c.b16 %v1011, %v1003
    %v1188 = vpack.c.b16 %v1012, %v1004
    %v1189 = vpack.c.b16 %v1013, %v1005
    %v1190 = vpack.c.b16 %v1014, %v1006
    %v1191 = vpack.c.b16 %v1015, %v1007
    %v1192 = vpack.c.b16 %v1016, %v1008
    %v1193 = vpack.c.b16 %v1017, %v1009
    %v1194 = vpack.c.b16 %v1018, %v1010
    %v1195 = vpack.c.b16 %v1027, %v1019
    %v1196 = vpack.c.b16 %v1028, %v1020
    %v1197 = vpack.c.b16 %v1029, %v1021
    %v1198 = vpack.c.b16 %v1030, %v1022
    %v1199 = vpack.c.b16 %v1031, %v1023
    %v1200 = vpack.c.b16 %v1032, %v1024
    %v1201 = vpack.c.b16 %v1033, %v1025
    %v1202 = vpack.c.b16 %v1034, %v1026
    %v1203 = vpack.c.b16 %v1043, %v1035
    %v1204 = vpack.c.b16 %v1044, %v1036
    %v1205 = vpack.c.b16 %v1045, %v1037
    %v1206 = vpack.c.b16 %v1046, %v1038
    %v1207 = vpack.c.b16 %v1047, %v1039
    %v1208 = vpack.c.b16 %v1048, %v1040
    %v1209 = vpack.c.b16 %v1049, %v1041
    %v1210 = vpack.c.b16 %v1050, %v1042
    %v1211 = vpack.c.b16 %v1059, %v1051
    %v1212 = vpack.c.b16 %v1060, %v1052
    %v1213 = vpack.c.b16 %v1061, %v1053
    %v1214 = vpack.c.b16 %v1062, %v1054
    %v1215 = vpack.c.b16 %v1063, %v1055
    %v1216 = vpack.c.b16 %v1064, %v1056
    %v1217 = vpack.c.b16 %v1065, %v1057
    %v1218 = vpack.c.b16 %v1066, %v1058
    %v1219 = vpack.c.b16 %v1075, %v1067
    %v1220 = vpack.c.b16 %v1076, %v1068
    %v1221 = vpack.c.b16 %v1077, %v1069
    %v1222 = vpack.c.b16 %v1078, %v1070
    %v1223 = vpack.c.b16 %v1079, %v1071
    %v1224 = vpack.c.b16 %v1080, %v1072
    %v1225 = vpack.c.b16 %v1081, %v1073
    %v1226 = vpack.c.b16 %v1082, %v1074
    %v1227 = vpack.c.b16 %v1091, %v1083
    %v1228 = vpack.c.b16 %v1092, %v1084
    %v1229 = vpack.c.b16 %v1093, %v1085
    %v1230 = vpack.c.b16 %v1094, %v1086
    %v1231 = vpack.c.b16 %v1095, %v1087
    %v1232 = vpack.c.b16 %v1096, %v1088
    %v1233 = vpack.c.b16 %v1097, %v1089
    %v1234 = vpack.c.b16 %v1098, %v1090
    %v1235 = vpack.c.b16 %v1107, %v1099
    %v1236 = vpack.c.b16 %v1108, %v1100
    %v1237 = vpack.c.b16 %v1109, %v1101
    %v1238 = vpack.c.b16 %v1110, %v1102
    %v1239 = vpack.c.b16 %v1111, %v1103
    %v1240 = vpack.c.b16 %v1112, %v1104
    %v1241 = vpack.c.b16 %v1113, %v1105
    %v1242 = vpack.c.b16 %v1114, %v1106
    %1371 = vmatprep.subr.bf16.mxu0 %v1116
    %1372 = vmatpush1.bf16.msra.mxu0 %v1115
    %1373 = vmatprep.subr.bf16.mxu0 %v1124
    %1374 = vmatpush1.bf16.msra.mxu0 %v1123
    %1375 = vmatprep.subr.bf16.mxu0 %v1132
    %1376 = vmatpush1.bf16.msra.mxu0 %v1131
    %1377 = vmatprep.subr.bf16.mxu0 %v1140
    %1378 = vmatpush1.bf16.msra.mxu0 %v1139
    %1379 = vmatprep.subr.bf16.mxu0 %v1148
    %1380 = vmatpush1.bf16.msra.mxu0 %v1147
    %1381 = vmatprep.subr.bf16.mxu0 %v1156
    %1382 = vmatpush1.bf16.msra.mxu0 %v1155
    %1383 = vmatprep.subr.bf16.mxu0 %v1164
    %1384 = vmatpush1.bf16.msra.mxu0 %v1163
    %1385 = vmatprep.subr.bf16.mxu0 %v1172
    %1386 = vmatpush1.bf16.msra.mxu0 %v1171
    %1387 = vmatprep.subr.bf16.mxu0 %v1180
    %1388 = vmatpush1.bf16.msra.mxu0 %v1179
    %1389 = vmatprep.subr.bf16.mxu0 %v1188
    %1390 = vmatpush1.bf16.msra.mxu0 %v1187
    %1391 = vmatprep.subr.bf16.mxu0 %v1196
    %1392 = vmatpush1.bf16.msra.mxu0 %v1195
    %1393 = vmatprep.subr.bf16.mxu0 %v1204
    %1394 = vmatpush1.bf16.msra.mxu0 %v1203
    %1395 = vmatprep.subr.bf16.mxu0 %v1212
    %1396 = vmatpush1.bf16.msra.mxu0 %v1211
    %1397 = vmatprep.subr.bf16.mxu0 %v1220
    %1398 = vmatpush1.bf16.msra.mxu0 %v1219
    %1399 = vmatprep.subr.bf16.mxu0 %v1228
    %1400 = vmatpush1.bf16.msra.mxu0 %v1227
    %1401 = vmatprep.subr.bf16.mxu0 %v1236
    %1402 = vmatpush1.bf16.msra.mxu0 %v1235
    %1403 = vmatprep.mubr.bf16.mxu0 %v719
    %1404 = vmatmul.mubr.bf16.gmra.mrb[0].mxu0 %v718
    %v1405 = vpop.f32.mrb[0].mxu0
    %v1406 = vadd.f32 %v723, %v1405
    %v1407 = vpop.f32.mrb[0].mxu0
    %v1408 = vadd.f32 %v724, %v1407
    %v1409 = vpop.f32.mrb[0].mxu0
    %v1410 = vpop.f32.mrb[0].mxu0
    %1411 = vdwg.mxu0
    %1412 = vmatprep.subr.bf16.mxu0 %v1118
    %1413 = vmatpush1.bf16.msra.mxu0 %v1117
    %1414 = vmatprep.subr.bf16.mxu0 %v1126
    %1415 = vmatpush1.bf16.msra.mxu0 %v1125
    %1416 = vmatprep.subr.bf16.mxu0 %v1134
    %1417 = vmatpush1.bf16.msra.mxu0 %v1133
    %1418 = vmatprep.subr.bf16.mxu0 %v1142
    %1419 = vmatpush1.bf16.msra.mxu0 %v1141
    %1420 = vmatprep.subr.bf16.mxu0 %v1150
    %1421 = vmatpush1.bf16.msra.mxu0 %v1149
    %1422 = vmatprep.subr.bf16.mxu0 %v1158
    %1423 = vmatpush1.bf16.msra.mxu0 %v1157
    %1424 = vmatprep.subr.bf16.mxu0 %v1166
    %1425 = vmatpush1.bf16.msra.mxu0 %v1165
    %1426 = vmatprep.subr.bf16.mxu0 %v1174
    %1427 = vmatpush1.bf16.msra.mxu0 %v1173
    %1428 = vmatprep.subr.bf16.mxu0 %v1182
    %1429 = vmatpush1.bf16.msra.mxu0 %v1181
    %1430 = vmatprep.subr.bf16.mxu0 %v1190
    %1431 = vmatpush1.bf16.msra.mxu0 %v1189
    %1432 = vmatprep.subr.bf16.mxu0 %v1198
    %1433 = vmatpush1.bf16.msra.mxu0 %v1197
    %1434 = vmatprep.subr.bf16.mxu0 %v1206
    %1435 = vmatpush1.bf16.msra.mxu0 %v1205
    %1436 = vmatprep.subr.bf16.mxu0 %v1214
    %1437 = vmatpush1.bf16.msra.mxu0 %v1213
    %1438 = vmatprep.subr.bf16.mxu0 %v1222
    %1439 = vmatpush1.bf16.msra.mxu0 %v1221
    %1440 = vmatprep.subr.bf16.mxu0 %v1230
    %1441 = vmatpush1.bf16.msra.mxu0 %v1229
    %1442 = vmatprep.subr.bf16.mxu0 %v1238
    %1443 = vmatpush1.bf16.msra.mxu0 %v1237
    %1444 = vmatprep.mubr.bf16.mxu0 %v719
    %1445 = vmatmul.mubr.bf16.gmra.mrb[0].mxu0 %v718
    %v1446 = vpop.f32.mrb[0].mxu0
    %v1447 = vadd.f32 %v725, %v1446
    %v1448 = vpop.f32.mrb[0].mxu0
    %v1449 = vadd.f32 %v726, %v1448
    %v1450 = vpop.f32.mrb[0].mxu0
    %v1451 = vpop.f32.mrb[0].mxu0
    %1452 = vdwg.mxu0
    %1453 = vmatprep.subr.bf16.mxu0 %v1120
    %1454 = vmatpush1.bf16.msra.mxu0 %v1119
    %1455 = vmatprep.subr.bf16.mxu0 %v1128
    %1456 = vmatpush1.bf16.msra.mxu0 %v1127
    %1457 = vmatprep.subr.bf16.mxu0 %v1136
    %1458 = vmatpush1.bf16.msra.mxu0 %v1135
    %1459 = vmatprep.subr.bf16.mxu0 %v1144
    %1460 = vmatpush1.bf16.msra.mxu0 %v1143
    %1461 = vmatprep.subr.bf16.mxu0 %v1152
    %1462 = vmatpush1.bf16.msra.mxu0 %v1151
    %1463 = vmatprep.subr.bf16.mxu0 %v1160
    %1464 = vmatpush1.bf16.msra.mxu0 %v1159
    %1465 = vmatprep.subr.bf16.mxu0 %v1168
    %1466 = vmatpush1.bf16.msra.mxu0 %v1167
    %1467 = vmatprep.subr.bf16.mxu0 %v1176
    %1468 = vmatpush1.bf16.msra.mxu0 %v1175
    %1469 = vmatprep.subr.bf16.mxu0 %v1184
    %1470 = vmatpush1.bf16.msra.mxu0 %v1183
    %1471 = vmatprep.subr.bf16.mxu0 %v1192
    %1472 = vmatpush1.bf16.msra.mxu0 %v1191
    %1473 = vmatprep.subr.bf16.mxu0 %v1200
    %1474 = vmatpush1.bf16.msra.mxu0 %v1199
    %1475 = vmatprep.subr.bf16.mxu0 %v1208
    %1476 = vmatpush1.bf16.msra.mxu0 %v1207
    %1477 = vmatprep.subr.bf16.mxu0 %v1216
    %1478 = vmatpush1.bf16.msra.mxu0 %v1215
    %1479 = vmatprep.subr.bf16.mxu0 %v1224
    %1480 = vmatpush1.bf16.msra.mxu0 %v1223
    %1481 = vmatprep.subr.bf16.mxu0 %v1232
    %1482 = vmatpush1.bf16.msra.mxu0 %v1231
    %1483 = vmatprep.subr.bf16.mxu0 %v1240
    %1484 = vmatpush1.bf16.msra.mxu0 %v1239
    %1485 = vmatprep.mubr.bf16.mxu0 %v719
    %1486 = vmatmul.mubr.bf16.gmra.mrb[0].mxu0 %v718
    %v1487 = vpop.f32.mrb[0].mxu0
    %v1488 = vadd.f32 %v727, %v1487
    %v1489 = vpop.f32.mrb[0].mxu0
    %v1490 = vadd.f32 %v728, %v1489
    %v1491 = vpop.f32.mrb[0].mxu0
    %v1492 = vpop.f32.mrb[0].mxu0
    %1493 = vdwg.mxu0
    %1494 = vmatprep.subr.bf16.mxu0 %v1122
    %1495 = vmatpush1.bf16.msra.mxu0 %v1121
    %1496 = vmatprep.subr.bf16.mxu0 %v1130
    %1497 = vmatpush1.bf16.msra.mxu0 %v1129
    %1498 = vmatprep.subr.bf16.mxu0 %v1138
    %1499 = vmatpush1.bf16.msra.mxu0 %v1137
    %1500 = vmatprep.subr.bf16.mxu0 %v1146
    %1501 = vmatpush1.bf16.msra.mxu0 %v1145
    %1502 = vmatprep.subr.bf16.mxu0 %v1154
    %1503 = vmatpush1.bf16.msra.mxu0 %v1153
    %1504 = vmatprep.subr.bf16.mxu0 %v1162
    %1505 = vmatpush1.bf16.msra.mxu0 %v1161
    %1506 = vmatprep.subr.bf16.mxu0 %v1170
    %1507 = vmatpush1.bf16.msra.mxu0 %v1169
    %1508 = vmatprep.subr.bf16.mxu0 %v1178
    %1509 = vmatpush1.bf16.msra.mxu0 %v1177
    %1510 = vmatprep.subr.bf16.mxu0 %v1186
    %1511 = vmatpush1.bf16.msra.mxu0 %v1185
    %1512 = vmatprep.subr.bf16.mxu0 %v1194
    %1513 = vmatpush1.bf16.msra.mxu0 %v1193
    %1514 = vmatprep.subr.bf16.mxu0 %v1202
    %1515 = vmatpush1.bf16.msra.mxu0 %v1201
    %1516 = vmatprep.subr.bf16.mxu0 %v1210
    %1517 = vmatpush1.bf16.msra.mxu0 %v1209
    %1518 = vmatprep.subr.bf16.mxu0 %v1218
    %1519 = vmatpush1.bf16.msra.mxu0 %v1217
    %1520 = vmatprep.subr.bf16.mxu0 %v1226
    %1521 = vmatpush1.bf16.msra.mxu0 %v1225
    %1522 = vmatprep.subr.bf16.mxu0 %v1234
    %1523 = vmatpush1.bf16.msra.mxu0 %v1233
    %1524 = vmatprep.subr.bf16.mxu0 %v1242
    %1525 = vmatpush1.bf16.msra.mxu0 %v1241
    %1526 = vmatprep.mubr.bf16.mxu0 %v719
    %1527 = vmatmul.mubr.bf16.gmra.mrb[0].mxu0 %v718
    %v1528 = vpop.f32.mrb[0].mxu0
    %v1529 = vadd.f32 %v729, %v1528
    %v1530 = vpop.f32.mrb[0].mxu0
    %v1531 = vadd.f32 %v730, %v1530
    %v1532 = vpop.f32.mrb[0].mxu0
    %v1533 = vpop.f32.mrb[0].mxu0
    %1534 = vdwg.mxu0
    %v1535 = vxor.u32 %v1406, 2147483648
    %v1536 = vxor.u32 %v1408, 2147483648
    %v1537 = vxor.u32 %v1447, 2147483648
    %v1538 = vxor.u32 %v1449, 2147483648
    %v1539 = vxor.u32 %v1488, 2147483648
    %v1540 = vxor.u32 %v1490, 2147483648
    %v1541 = vmul.f32 %v1535, 1.442695
    %v1542 = vpow.pop %v1541
    %v1543 = vmul.f32 %v1536, 1.442695
    %v1544 = vpow.pop %v1543
    %v1545 = vmul.f32 %v1537, 1.442695
    %v1546 = vpow.pop %v1545
    %v1547 = vmul.f32 %v1538, 1.442695
    %v1548 = vpow.pop %v1547
    %v1549 = vmul.f32 %v1539, 1.442695
    %v1550 = vpow.pop %v1549
    %v1551 = vmul.f32 %v1540, 1.442695
    %v1552 = vpow.pop %v1551
    %v1553 = vadd.f32 %v1542, 1.0
    %v1554 = vadd.f32 %v1544, 1.0
    %v1555 = vadd.f32 %v1546, 1.0
    %v1556 = vadd.f32 %v1548, 1.0
    %v1557 = vadd.f32 %v1550, 1.0
    %v1558 = vadd.f32 %v1552, 1.0
    %v1559 = vrcp.pop %v1553
    %v1560 = vmul.f32 1.0, %v1559
    %v1561 = vrcp.pop %v1554
    %v1562 = vmul.f32 1.0, %v1561
    %v1563 = vrcp.pop %v1555
    %v1564 = vmul.f32 1.0, %v1563
    %v1565 = vrcp.pop %v1556
    %v1566 = vmul.f32 1.0, %v1565
    %v1567 = vrcp.pop %v1557
    %v1568 = vmul.f32 1.0, %v1567
    %v1569 = vrcp.pop %v1558
    %v1570 = vmul.f32 1.0, %v1569
    %v1571 = vtanh.pop %v1529
    %v1572 = vtanh.pop %v1531
    %v1573 = vmul.f32 %v1564, %v716
    %v1574 = vmul.f32 %v1566, %v717
    %v1575 = vmul.f32 %v1560, %v1571
    %v1576 = vmul.f32 %v1562, %v1572
    %v1577 = vadd.f32 %v1573, %v1575
    %v1578 = vadd.f32 %v1574, %v1576
    %v1579 = vtanh.pop %v1577
    %v1580 = vtanh.pop %v1578
    %v1581 = vmul.f32 %v1568, %v1579
    %v1582 = vmul.f32 %v1570, %v1580
    %v1583 = vstv %s709
    %vm1584 = vcmp.gt.s32.totalorder %v578, %v1583
    %v1585 = vsel %vm1584, 1, 0
    %1586 = vset.pattern.permute.xlu0 0
    %1587 = vperm.xlu0 %1586, %v1585
    %v1588 = vpop.permute.xlu0 %1587
    %vm1589 = vcmp.eq.s32.totalorder %v1588, 1
    %v1590 = vsel %vm1589, %v1581, %v714
    %v1591 = vsel %vm1589, %v1582, %v715
    %v1592 = vsel %vm1589, %v1577, %v716
    %v1593 = vsel %vm1589, %v1578, %v717
  $region42: #{ro_inflect_forward.1} parent=0 // loop_footer
    %s711 = sadd.s32 %s709, 1
  $region43: #{ro_inflect_forward.1} parent=0 // loop_footer_branch
    %708 = sbr.rel target = $region39
  $region44: #{ro_inflect_forward.1} parent=0 // loop_exit
    _
  %v1594 = vpack.c.bf16 %v714, %v714
  %v1595 = vpack.c.bf16 %v715, %v715
  %v1596 = vld [vmem:[%s6] sm:$0xff]
  %v1597 = vld [vmem:[%s6 + $0x8] sm:$0xff]
  %v1598 = vld [vmem:[%s6 + $0x10] sm:$0xff]
  %v1599 = vld [vmem:[%s6 + $0x18] sm:$0xff]
  %v1600 = vld [vmem:[%s6 + $0x20] sm:$0xff]
  %v1601 = vld [vmem:[%s6 + $0x28] sm:$0xff]
  %v1602 = vld [vmem:[%s6 + $0x30] sm:$0xff]
  %v1603 = vld [vmem:[%s6 + $0x38] sm:$0xff]
  %v1604 = vld [vmem:[%s6 + $0x40] sm:$0xff]
  %v1605 = vld [vmem:[%s6 + $0x48] sm:$0xff]
  %v1606 = vld [vmem:[%s6 + $0x50] sm:$0xff]
  %v1607 = vld [vmem:[%s6 + $0x58] sm:$0xff]
  %v1608 = vld [vmem:[%s6 + $0x60] sm:$0xff]
  %v1609 = vld [vmem:[%s6 + $0x68] sm:$0xff]
  %v1610 = vld [vmem:[%s6 + $0x70] sm:$0xff]
  %v1611 = vld [vmem:[%s6 + $0x78] sm:$0xff]
  %v1612 = vld [vmem:[%s6 + $0x80] sm:$0xff]
  %v1613 = vld [vmem:[%s6 + $0x88] sm:$0xff]
  %v1614 = vld [vmem:[%s6 + $0x90] sm:$0xff]
  %v1615 = vld [vmem:[%s6 + $0x98] sm:$0xff]
  %v1616 = vld [vmem:[%s6 + $0xa0] sm:$0xff]
  %v1617 = vld [vmem:[%s6 + $0xa8] sm:$0xff]
  %v1618 = vld [vmem:[%s6 + $0xb0] sm:$0xff]
  %v1619 = vld [vmem:[%s6 + $0xb8] sm:$0xff]
  %v1620 = vld [vmem:[%s6 + $0xc0] sm:$0xff]
  %v1621 = vld [vmem:[%s6 + $0xc8] sm:$0xff]
  %v1622 = vld [vmem:[%s6 + $0xd0] sm:$0xff]
  %v1623 = vld [vmem:[%s6 + $0xd8] sm:$0xff]
  %v1624 = vld [vmem:[%s6 + $0xe0] sm:$0xff]
  %v1625 = vld [vmem:[%s6 + $0xe8] sm:$0xff]
  %v1626 = vld [vmem:[%s6 + $0xf0] sm:$0xff]
  %v1627 = vld [vmem:[%s6 + $0xf8] sm:$0xff]
  %v1628 = vld [vmem:[%s6 + $0x100] sm:$0xff]
  %v1629 = vld [vmem:[%s6 + $0x108] sm:$0xff]
  %v1630 = vld [vmem:[%s6 + $0x110] sm:$0xff]
  %v1631 = vld [vmem:[%s6 + $0x118] sm:$0xff]
  %v1632 = vld [vmem:[%s6 + $0x120] sm:$0xff]
  %v1633 = vld [vmem:[%s6 + $0x128] sm:$0xff]
  %v1634 = vld [vmem:[%s6 + $0x130] sm:$0xff]
  %v1635 = vld [vmem:[%s6 + $0x138] sm:$0xff]
  %v1636 = vld [vmem:[%s6 + $0x140] sm:$0xff]
  %v1637 = vld [vmem:[%s6 + $0x148] sm:$0xff]
  %v1638 = vld [vmem:[%s6 + $0x150] sm:$0xff]
  %v1639 = vld [vmem:[%s6 + $0x158] sm:$0xff]
  %v1640 = vld [vmem:[%s6 + $0x160] sm:$0xff]
  %v1641 = vld [vmem:[%s6 + $0x168] sm:$0xff]
  %v1642 = vld [vmem:[%s6 + $0x170] sm:$0xff]
  %v1643 = vld [vmem:[%s6 + $0x178] sm:$0xff]
  %v1644 = vld [vmem:[%s6 + $0x180] sm:$0xff]
  %v1645 = vld [vmem:[%s6 + $0x188] sm:$0xff]
  %v1646 = vld [vmem:[%s6 + $0x190] sm:$0xff]
  %v1647 = vld [vmem:[%s6 + $0x198] sm:$0xff]
  %v1648 = vld [vmem:[%s6 + $0x1a0] sm:$0xff]
  %v1649 = vld [vmem:[%s6 + $0x1a8] sm:$0xff]
  %v1650 = vld [vmem:[%s6 + $0x1b0] sm:$0xff]
  %v1651 = vld [vmem:[%s6 + $0x1b8] sm:$0xff]
  %v1652 = vld [vmem:[%s6 + $0x1c0] sm:$0xff]
  %v1653 = vld [vmem:[%s6 + $0x1c8] sm:$0xff]
  %v1654 = vld [vmem:[%s6 + $0x1d0] sm:$0xff]
  %v1655 = vld [vmem:[%s6 + $0x1d8] sm:$0xff]
  %v1656 = vld [vmem:[%s6 + $0x1e0] sm:$0xff]
  %v1657 = vld [vmem:[%s6 + $0x1e8] sm:$0xff]
  %v1658 = vld [vmem:[%s6 + $0x1f0] sm:$0xff]
  %v1659 = vld [vmem:[%s6 + $0x1f8] sm:$0xff]
  %v1660 = vld [vmem:[%s7] sm:$0xf]
  %v1662 = vlaneseq
  %v1663 = vshrl.u32 %v1662, 7
  %v1664 = vsub.s32 0, %v1663
  %v1665 = vrot.slane %v1660, %v1664
  %v1666 = vlaneseq
  %v1667 = vshrl.u32 %v1666, 7
  %v1668 = vsub.s32 1, %v1667
  %v1669 = vrot.slane %v1660, %v1668
  %v1670 = vlaneseq
  %v1671 = vshrl.u32 %v1670, 7
  %v1672 = vsub.s32 2, %v1671
  %v1673 = vrot.slane %v1660, %v1672
  %v1674 = vlaneseq
  %v1675 = vshrl.u32 %v1674, 7
  %v1676 = vsub.s32 3, %v1675
  %v1677 = vrot.slane %v1660, %v1676
  %v1746 = vunpack.c.l.b16 %v1596
  %v1747 = vunpack.c.h.b16 %v1596
  %v1748 = vunpack.c.l.b16 %v1597
  %v1749 = vunpack.c.h.b16 %v1597
  %v1750 = vunpack.c.l.b16 %v1598
  %v1751 = vunpack.c.h.b16 %v1598
  %v1752 = vunpack.c.l.b16 %v1599
  %v1753 = vunpack.c.h.b16 %v1599
  %v1754 = vunpack.c.l.b16 %v1600
  %v1755 = vunpack.c.h.b16 %v1600
  %v1756 = vunpack.c.l.b16 %v1601
  %v1757 = vunpack.c.h.b16 %v1601
  %v1758 = vunpack.c.l.b16 %v1602
  %v1759 = vunpack.c.h.b16 %v1602
  %v1760 = vunpack.c.l.b16 %v1603
  %v1761 = vunpack.c.h.b16 %v1603
  %v1762 = vunpack.c.l.b16 %v1604
  %v1763 = vunpack.c.h.b16 %v1604
  %v1764 = vunpack.c.l.b16 %v1605
  %v1765 = vunpack.c.h.b16 %v1605
  %v1766 = vunpack.c.l.b16 %v1606
  %v1767 = vunpack.c.h.b16 %v1606
  %v1768 = vunpack.c.l.b16 %v1607
  %v1769 = vunpack.c.h.b16 %v1607
  %v1770 = vunpack.c.l.b16 %v1608
  %v1771 = vunpack.c.h.b16 %v1608
  %v1772 = vunpack.c.l.b16 %v1609
  %v1773 = vunpack.c.h.b16 %v1609
  %v1774 = vunpack.c.l.b16 %v1610
  %v1775 = vunpack.c.h.b16 %v1610
  %v1776 = vunpack.c.l.b16 %v1611
  %v1777 = vunpack.c.h.b16 %v1611
  %v1778 = vunpack.c.l.b16 %v1612
  %v1779 = vunpack.c.h.b16 %v1612
  %v1780 = vunpack.c.l.b16 %v1613
  %v1781 = vunpack.c.h.b16 %v1613
  %v1782 = vunpack.c.l.b16 %v1614
  %v1783 = vunpack.c.h.b16 %v1614
  %v1784 = vunpack.c.l.b16 %v1615
  %v1785 = vunpack.c.h.b16 %v1615
  %v1786 = vunpack.c.l.b16 %v1616
  %v1787 = vunpack.c.h.b16 %v1616
  %v1788 = vunpack.c.l.b16 %v1617
  %v1789 = vunpack.c.h.b16 %v1617
  %v1790 = vunpack.c.l.b16 %v1618
  %v1791 = vunpack.c.h.b16 %v1618
  %v1792 = vunpack.c.l.b16 %v1619
  %v1793 = vunpack.c.h.b16 %v1619
  %v1794 = vunpack.c.l.b16 %v1620
  %v1795 = vunpack.c.h.b16 %v1620
  %v1796 = vunpack.c.l.b16 %v1621
  %v1797 = vunpack.c.h.b16 %v1621
  %v1798 = vunpack.c.l.b16 %v1622
  %v1799 = vunpack.c.h.b16 %v1622
  %v1800 = vunpack.c.l.b16 %v1623
  %v1801 = vunpack.c.h.b16 %v1623
  %v1802 = vunpack.c.l.b16 %v1624
  %v1803 = vunpack.c.h.b16 %v1624
  %v1804 = vunpack.c.l.b16 %v1625
  %v1805 = vunpack.c.h.b16 %v1625
  %v1806 = vunpack.c.l.b16 %v1626
  %v1807 = vunpack.c.h.b16 %v1626
  %v1808 = vunpack.c.l.b16 %v1627
  %v1809 = vunpack.c.h.b16 %v1627
  %v1810 = vunpack.c.l.b16 %v1628
  %v1811 = vunpack.c.h.b16 %v1628
  %v1812 = vunpack.c.l.b16 %v1629
  %v1813 = vunpack.c.h.b16 %v1629
  %v1814 = vunpack.c.l.b16 %v1630
  %v1815 = vunpack.c.h.b16 %v1630
  %v1816 = vunpack.c.l.b16 %v1631
  %v1817 = vunpack.c.h.b16 %v1631
  %v1818 = vunpack.c.l.b16 %v1632
  %v1819 = vunpack.c.h.b16 %v1632
  %v1820 = vunpack.c.l.b16 %v1633
  %v1821 = vunpack.c.h.b16 %v1633
  %v1822 = vunpack.c.l.b16 %v1634
  %v1823 = vunpack.c.h.b16 %v1634
  %v1824 = vunpack.c.l.b16 %v1635
  %v1825 = vunpack.c.h.b16 %v1635
  %v1826 = vunpack.c.l.b16 %v1636
  %v1827 = vunpack.c.h.b16 %v1636
  %v1828 = vunpack.c.l.b16 %v1637
  %v1829 = vunpack.c.h.b16 %v1637
  %v1830 = vunpack.c.l.b16 %v1638
  %v1831 = vunpack.c.h.b16 %v1638
  %v1832 = vunpack.c.l.b16 %v1639
  %v1833 = vunpack.c.h.b16 %v1639
  %v1834 = vunpack.c.l.b16 %v1640
  %v1835 = vunpack.c.h.b16 %v1640
  %v1836 = vunpack.c.l.b16 %v1641
  %v1837 = vunpack.c.h.b16 %v1641
  %v1838 = vunpack.c.l.b16 %v1642
  %v1839 = vunpack.c.h.b16 %v1642
  %v1840 = vunpack.c.l.b16 %v1643
  %v1841 = vunpack.c.h.b16 %v1643
  %v1842 = vunpack.c.l.b16 %v1644
  %v1843 = vunpack.c.h.b16 %v1644
  %v1844 = vunpack.c.l.b16 %v1645
  %v1845 = vunpack.c.h.b16 %v1645
  %v1846 = vunpack.c.l.b16 %v1646
  %v1847 = vunpack.c.h.b16 %v1646
  %v1848 = vunpack.c.l.b16 %v1647
  %v1849 = vunpack.c.h.b16 %v1647
  %v1850 = vunpack.c.l.b16 %v1648
  %v1851 = vunpack.c.h.b16 %v1648
  %v1852 = vunpack.c.l.b16 %v1649
  %v1853 = vunpack.c.h.b16 %v1649
  %v1854 = vunpack.c.l.b16 %v1650
  %v1855 = vunpack.c.h.b16 %v1650
  %v1856 = vunpack.c.l.b16 %v1651
  %v1857 = vunpack.c.h.b16 %v1651
  %v1858 = vunpack.c.l.b16 %v1652
  %v1859 = vunpack.c.h.b16 %v1652
  %v1860 = vunpack.c.l.b16 %v1653
  %v1861 = vunpack.c.h.b16 %v1653
  %v1862 = vunpack.c.l.b16 %v1654
  %v1863 = vunpack.c.h.b16 %v1654
  %v1864 = vunpack.c.l.b16 %v1655
  %v1865 = vunpack.c.h.b16 %v1655
  %v1866 = vunpack.c.l.b16 %v1656
  %v1867 = vunpack.c.h.b16 %v1656
  %v1868 = vunpack.c.l.b16 %v1657
  %v1869 = vunpack.c.h.b16 %v1657
  %v1870 = vunpack.c.l.b16 %v1658
  %v1871 = vunpack.c.h.b16 %v1658
  %v1872 = vunpack.c.l.b16 %v1659
  %v1873 = vunpack.c.h.b16 %v1659
  %v1874 = vpack.c.b16 %v1750, %v1746
  %v1875 = vpack.c.b16 %v1751, %v1747
  %v1876 = vpack.c.b16 %v1752, %v1748
  %v1877 = vpack.c.b16 %v1753, %v1749
  %v1878 = vpack.c.b16 %v1758, %v1754
  %v1879 = vpack.c.b16 %v1759, %v1755
  %v1880 = vpack.c.b16 %v1760, %v1756
  %v1881 = vpack.c.b16 %v1761, %v1757
  %v1882 = vpack.c.b16 %v1766, %v1762
  %v1883 = vpack.c.b16 %v1767, %v1763
  %v1884 = vpack.c.b16 %v1768, %v1764
  %v1885 = vpack.c.b16 %v1769, %v1765
  %v1886 = vpack.c.b16 %v1774, %v1770
  %v1887 = vpack.c.b16 %v1775, %v1771
  %v1888 = vpack.c.b16 %v1776, %v1772
  %v1889 = vpack.c.b16 %v1777, %v1773
  %v1890 = vpack.c.b16 %v1782, %v1778
  %v1891 = vpack.c.b16 %v1783, %v1779
  %v1892 = vpack.c.b16 %v1784, %v1780
  %v1893 = vpack.c.b16 %v1785, %v1781
  %v1894 = vpack.c.b16 %v1790, %v1786
  %v1895 = vpack.c.b16 %v1791, %v1787
  %v1896 = vpack.c.b16 %v1792, %v1788
  %v1897 = vpack.c.b16 %v1793, %v1789
  %v1898 = vpack.c.b16 %v1798, %v1794
  %v1899 = vpack.c.b16 %v1799, %v1795
  %v1900 = vpack.c.b16 %v1800, %v1796
  %v1901 = vpack.c.b16 %v1801, %v1797
  %v1902 = vpack.c.b16 %v1806, %v1802
  %v1903 = vpack.c.b16 %v1807, %v1803
  %v1904 = vpack.c.b16 %v1808, %v1804
  %v1905 = vpack.c.b16 %v1809, %v1805
  %v1906 = vpack.c.b16 %v1814, %v1810
  %v1907 = vpack.c.b16 %v1815, %v1811
  %v1908 = vpack.c.b16 %v1816, %v1812
  %v1909 = vpack.c.b16 %v1817, %v1813
  %v1910 = vpack.c.b16 %v1822, %v1818
  %v1911 = vpack.c.b16 %v1823, %v1819
  %v1912 = vpack.c.b16 %v1824, %v1820
  %v1913 = vpack.c.b16 %v1825, %v1821
  %v1914 = vpack.c.b16 %v1830, %v1826
  %v1915 = vpack.c.b16 %v1831, %v1827
  %v1916 = vpack.c.b16 %v1832, %v1828
  %v1917 = vpack.c.b16 %v1833, %v1829
  %v1918 = vpack.c.b16 %v1838, %v1834
  %v1919 = vpack.c.b16 %v1839, %v1835
  %v1920 = vpack.c.b16 %v1840, %v1836
  %v1921 = vpack.c.b16 %v1841, %v1837
  %v1922 = vpack.c.b16 %v1846, %v1842
  %v1923 = vpack.c.b16 %v1847, %v1843
  %v1924 = vpack.c.b16 %v1848, %v1844
  %v1925 = vpack.c.b16 %v1849, %v1845
  %v1926 = vpack.c.b16 %v1854, %v1850
  %v1927 = vpack.c.b16 %v1855, %v1851
  %v1928 = vpack.c.b16 %v1856, %v1852
  %v1929 = vpack.c.b16 %v1857, %v1853
  %v1930 = vpack.c.b16 %v1862, %v1858
  %v1931 = vpack.c.b16 %v1863, %v1859
  %v1932 = vpack.c.b16 %v1864, %v1860
  %v1933 = vpack.c.b16 %v1865, %v1861
  %v1934 = vpack.c.b16 %v1870, %v1866
  %v1935 = vpack.c.b16 %v1871, %v1867
  %v1936 = vpack.c.b16 %v1872, %v1868
  %v1937 = vpack.c.b16 %v1873, %v1869
  %2002 = vmatprep.subr.bf16.mxu0 %v1875
  %2003 = vmatpush1.bf16.msra.mxu0 %v1874
  %2004 = vmatprep.subr.bf16.mxu0 %v1879
  %2005 = vmatpush1.bf16.msra.mxu0 %v1878
  %2006 = vmatprep.subr.bf16.mxu0 %v1883
  %2007 = vmatpush1.bf16.msra.mxu0 %v1882
  %2008 = vmatprep.subr.bf16.mxu0 %v1887
  %2009 = vmatpush1.bf16.msra.mxu0 %v1886
  %2010 = vmatprep.subr.bf16.mxu0 %v1891
  %2011 = vmatpush1.bf16.msra.mxu0 %v1890
  %2012 = vmatprep.subr.bf16.mxu0 %v1895
  %2013 = vmatpush1.bf16.msra.mxu0 %v1894
  %2014 = vmatprep.subr.bf16.mxu0 %v1899
  %2015 = vmatpush1.bf16.msra.mxu0 %v1898
  %2016 = vmatprep.subr.bf16.mxu0 %v1903
  %2017 = vmatpush1.bf16.msra.mxu0 %v1902
  %2018 = vmatprep.subr.bf16.mxu0 %v1907
  %2019 = vmatpush1.bf16.msra.mxu0 %v1906
  %2020 = vmatprep.subr.bf16.mxu0 %v1911
  %2021 = vmatpush1.bf16.msra.mxu0 %v1910
  %2022 = vmatprep.subr.bf16.mxu0 %v1915
  %2023 = vmatpush1.bf16.msra.mxu0 %v1914
  %2024 = vmatprep.subr.bf16.mxu0 %v1919
  %2025 = vmatpush1.bf16.msra.mxu0 %v1918
  %2026 = vmatprep.subr.bf16.mxu0 %v1923
  %2027 = vmatpush1.bf16.msra.mxu0 %v1922
  %2028 = vmatprep.subr.bf16.mxu0 %v1927
  %2029 = vmatpush1.bf16.msra.mxu0 %v1926
  %2030 = vmatprep.subr.bf16.mxu0 %v1931
  %2031 = vmatpush1.bf16.msra.mxu0 %v1930
  %2032 = vmatprep.subr.bf16.mxu0 %v1935
  %2033 = vmatpush1.bf16.msra.mxu0 %v1934
  %2034 = vmatprep.mubr.bf16.mxu0 %v1595
  %2035 = vmatmul.mubr.bf16.gmra.mrb[0].mxu0 %v1594
  %v2036 = vpop.f32.mrb[0].mxu0
  %v2037 = vadd.f32 %v1665, %v2036
  %v2038 = vpop.f32.mrb[0].mxu0
  %v2039 = vadd.f32 %v1669, %v2038
  %v2040 = vpop.f32.mrb[0].mxu0
  %v2041 = vpop.f32.mrb[0].mxu0
  %2042 = vdwg.mxu0
  %2043 = vmatprep.subr.bf16.mxu0 %v1877
  %2044 = vmatpush1.bf16.msra.mxu0 %v1876
  %2045 = vmatprep.subr.bf16.mxu0 %v1881
  %2046 = vmatpush1.bf16.msra.mxu0 %v1880
  %2047 = vmatprep.subr.bf16.mxu0 %v1885
  %2048 = vmatpush1.bf16.msra.mxu0 %v1884
  %2049 = vmatprep.subr.bf16.mxu0 %v1889
  %2050 = vmatpush1.bf16.msra.mxu0 %v1888
  %2051 = vmatprep.subr.bf16.mxu0 %v1893
  %2052 = vmatpush1.bf16.msra.mxu0 %v1892
  %2053 = vmatprep.subr.bf16.mxu0 %v1897
  %2054 = vmatpush1.bf16.msra.mxu0 %v1896
  %2055 = vmatprep.subr.bf16.mxu0 %v1901
  %2056 = vmatpush1.bf16.msra.mxu0 %v1900
  %2057 = vmatprep.subr.bf16.mxu0 %v1905
  %2058 = vmatpush1.bf16.msra.mxu0 %v1904
  %2059 = vmatprep.subr.bf16.mxu0 %v1909
  %2060 = vmatpush1.bf16.msra.mxu0 %v1908
  %2061 = vmatprep.subr.bf16.mxu0 %v1913
  %2062 = vmatpush1.bf16.msra.mxu0 %v1912
  %2063 = vmatprep.subr.bf16.mxu0 %v1917
  %2064 = vmatpush1.bf16.msra.mxu0 %v1916
  %2065 = vmatprep.subr.bf16.mxu0 %v1921
  %2066 = vmatpush1.bf16.msra.mxu0 %v1920
  %2067 = vmatprep.subr.bf16.mxu0 %v1925
  %2068 = vmatpush1.bf16.msra.mxu0 %v1924
  %2069 = vmatprep.subr.bf16.mxu0 %v1929
  %2070 = vmatpush1.bf16.msra.mxu0 %v1928
  %2071 = vmatprep.subr.bf16.mxu0 %v1933
  %2072 = vmatpush1.bf16.msra.mxu0 %v1932
  %2073 = vmatprep.subr.bf16.mxu0 %v1937
  %2074 = vmatpush1.bf16.msra.mxu0 %v1936
  %2075 = vmatprep.mubr.bf16.mxu0 %v1595
  %2076 = vmatmul.mubr.bf16.gmra.mrb[0].mxu0 %v1594
  %v2077 = vpop.f32.mrb[0].mxu0
  %v2078 = vadd.f32 %v1673, %v2077
  %v2079 = vpop.f32.mrb[0].mxu0
  %v2080 = vadd.f32 %v1677, %v2079
  %v2081 = vpop.f32.mrb[0].mxu0
  %v2082 = vpop.f32.mrb[0].mxu0
  %2083 = vdwg.mxu0
  %v2084 = vtanh.pop %v2037
  %v2085 = vtanh.pop %v2039
  %v2086 = vtanh.pop %v2078
  %v2087 = vtanh.pop %v2080
  %v2088 = vpack.c.bf16 %v2084, %v2084
  %v2089 = vpack.c.bf16 %v2085, %v2085
  %v2090 = vpack.c.bf16 %v2086, %v2086
  %v2091 = vpack.c.bf16 %v2087, %v2087
  %v2092 = vld [vmem:[%s8] sm:$0xf]
  %v2093 = vld [vmem:[%s8 + $0x4] sm:$0xf]
  %v2094 = vld [vmem:[%s8 + $0x8] sm:$0xf]
  %v2095 = vld [vmem:[%s8 + $0xc] sm:$0xf]
  %v2096 = vld [vmem:[%s8 + $0x10] sm:$0xf]
  %v2097 = vld [vmem:[%s8 + $0x14] sm:$0xf]
  %v2098 = vld [vmem:[%s8 + $0x18] sm:$0xf]
  %v2099 = vld [vmem:[%s8 + $0x1c] sm:$0xf]
  %v2100 = vld [vmem:[%s8 + $0x20] sm:$0xf]
  %v2101 = vld [vmem:[%s8 + $0x24] sm:$0xf]
  %v2102 = vld [vmem:[%s8 + $0x28] sm:$0xf]
  %v2103 = vld [vmem:[%s8 + $0x2c] sm:$0xf]
  %v2104 = vld [vmem:[%s8 + $0x30] sm:$0xf]
  %v2105 = vld [vmem:[%s8 + $0x34] sm:$0xf]
  %v2106 = vld [vmem:[%s8 + $0x38] sm:$0xf]
  %v2107 = vld [vmem:[%s8 + $0x3c] sm:$0xf]
  %v2108 = vld [vmem:[%s8 + $0x40] sm:$0xf]
  %v2109 = vld [vmem:[%s8 + $0x44] sm:$0xf]
  %v2110 = vld [vmem:[%s8 + $0x48] sm:$0xf]
  %v2111 = vld [vmem:[%s8 + $0x4c] sm:$0xf]
  %v2112 = vld [vmem:[%s8 + $0x50] sm:$0xf]
  %v2113 = vld [vmem:[%s8 + $0x54] sm:$0xf]
  %v2114 = vld [vmem:[%s8 + $0x58] sm:$0xf]
  %v2115 = vld [vmem:[%s8 + $0x5c] sm:$0xf]
  %v2116 = vld [vmem:[%s8 + $0x60] sm:$0xf]
  %v2117 = vld [vmem:[%s8 + $0x64] sm:$0xf]
  %v2118 = vld [vmem:[%s8 + $0x68] sm:$0xf]
  %v2119 = vld [vmem:[%s8 + $0x6c] sm:$0xf]
  %v2120 = vld [vmem:[%s8 + $0x70] sm:$0xf]
  %v2121 = vld [vmem:[%s8 + $0x74] sm:$0xf]
  %v2122 = vld [vmem:[%s8 + $0x78] sm:$0xf]
  %v2123 = vld [vmem:[%s8 + $0x7c] sm:$0xf]
  %v2124 = vld [vmem:[%s8 + $0x80] sm:$0xf]
  %v2125 = vld [vmem:[%s8 + $0x84] sm:$0xf]
  %v2126 = vld [vmem:[%s8 + $0x88] sm:$0xf]
  %v2127 = vld [vmem:[%s8 + $0x8c] sm:$0xf]
  %v2128 = vld [vmem:[%s8 + $0x90] sm:$0xf]
  %v2129 = vld [vmem:[%s8 + $0x94] sm:$0xf]
  %v2130 = vld [vmem:[%s8 + $0x98] sm:$0xf]
  %v2131 = vld [vmem:[%s8 + $0x9c] sm:$0xf]
  %v2132 = vld [vmem:[%s8 + $0xa0] sm:$0xf]
  %v2133 = vld [vmem:[%s8 + $0xa4] sm:$0xf]
  %v2134 = vld [vmem:[%s8 + $0xa8] sm:$0xf]
  %v2135 = vld [vmem:[%s8 + $0xac] sm:$0xf]
  %v2136 = vld [vmem:[%s8 + $0xb0] sm:$0xf]
  %v2137 = vld [vmem:[%s8 + $0xb4] sm:$0xf]
  %v2138 = vld [vmem:[%s8 + $0xb8] sm:$0xf]
  %v2139 = vld [vmem:[%s8 + $0xbc] sm:$0xf]
  %v2140 = vld [vmem:[%s8 + $0xc0] sm:$0xf]
  %v2141 = vld [vmem:[%s8 + $0xc4] sm:$0xf]
  %v2142 = vld [vmem:[%s8 + $0xc8] sm:$0xf]
  %v2143 = vld [vmem:[%s8 + $0xcc] sm:$0xf]
  %v2144 = vld [vmem:[%s8 + $0xd0] sm:$0xf]
  %v2145 = vld [vmem:[%s8 + $0xd4] sm:$0xf]
  %v2146 = vld [vmem:[%s8 + $0xd8] sm:$0xf]
  %v2147 = vld [vmem:[%s8 + $0xdc] sm:$0xf]
  %v2148 = vld [vmem:[%s8 + $0xe0] sm:$0xf]
  %v2149 = vld [vmem:[%s8 + $0xe4] sm:$0xf]
  %v2150 = vld [vmem:[%s8 + $0xe8] sm:$0xf]
  %v2151 = vld [vmem:[%s8 + $0xec] sm:$0xf]
  %v2152 = vld [vmem:[%s8 + $0xf0] sm:$0xf]
  %v2153 = vld [vmem:[%s8 + $0xf4] sm:$0xf]
  %v2154 = vld [vmem:[%s8 + $0xf8] sm:$0xf]
  %v2155 = vld [vmem:[%s8 + $0xfc] sm:$0xf]
  %v2156 = vld [vmem:[%s9] sm:$0x1]
  %v2158 = vlaneseq
  %v2159 = vshrl.u32 %v2158, 7
  %v2160 = vsub.s32 0, %v2159
  %v2161 = vrot.slane %v2156, %v2160
  %v2227 = vunpack.c.l.b16 %v2092
  %v2228 = vunpack.c.l.b16 %v2093
  %v2229 = vunpack.c.l.b16 %v2094
  %v2230 = vunpack.c.l.b16 %v2095
  %v2231 = vunpack.c.l.b16 %v2096
  %v2232 = vunpack.c.l.b16 %v2097
  %v2233 = vunpack.c.l.b16 %v2098
  %v2234 = vunpack.c.l.b16 %v2099
  %v2235 = vunpack.c.l.b16 %v2100
  %v2236 = vunpack.c.l.b16 %v2101
  %v2237 = vunpack.c.l.b16 %v2102
  %v2238 = vunpack.c.l.b16 %v2103
  %v2239 = vunpack.c.l.b16 %v2104
  %v2240 = vunpack.c.l.b16 %v2105
  %v2241 = vunpack.c.l.b16 %v2106
  %v2242 = vunpack.c.l.b16 %v2107
  %v2243 = vunpack.c.l.b16 %v2108
  %v2244 = vunpack.c.l.b16 %v2109
  %v2245 = vunpack.c.l.b16 %v2110
  %v2246 = vunpack.c.l.b16 %v2111
  %v2247 = vunpack.c.l.b16 %v2112
  %v2248 = vunpack.c.l.b16 %v2113
  %v2249 = vunpack.c.l.b16 %v2114
  %v2250 = vunpack.c.l.b16 %v2115
  %v2251 = vunpack.c.l.b16 %v2116
  %v2252 = vunpack.c.l.b16 %v2117
  %v2253 = vunpack.c.l.b16 %v2118
  %v2254 = vunpack.c.l.b16 %v2119
  %v2255 = vunpack.c.l.b16 %v2120
  %v2256 = vunpack.c.l.b16 %v2121
  %v2257 = vunpack.c.l.b16 %v2122
  %v2258 = vunpack.c.l.b16 %v2123
  %v2259 = vunpack.c.l.b16 %v2124
  %v2260 = vunpack.c.l.b16 %v2125
  %v2261 = vunpack.c.l.b16 %v2126
  %v2262 = vunpack.c.l.b16 %v2127
  %v2263 = vunpack.c.l.b16 %v2128
  %v2264 = vunpack.c.l.b16 %v2129
  %v2265 = vunpack.c.l.b16 %v2130
  %v2266 = vunpack.c.l.b16 %v2131
  %v2267 = vunpack.c.l.b16 %v2132
  %v2268 = vunpack.c.l.b16 %v2133
  %v2269 = vunpack.c.l.b16 %v2134
  %v2270 = vunpack.c.l.b16 %v2135
  %v2271 = vunpack.c.l.b16 %v2136
  %v2272 = vunpack.c.l.b16 %v2137
  %v2273 = vunpack.c.l.b16 %v2138
  %v2274 = vunpack.c.l.b16 %v2139
  %v2275 = vunpack.c.l.b16 %v2140
  %v2276 = vunpack.c.l.b16 %v2141
  %v2277 = vunpack.c.l.b16 %v2142
  %v2278 = vunpack.c.l.b16 %v2143
  %v2279 = vunpack.c.l.b16 %v2144
  %v2280 = vunpack.c.l.b16 %v2145
  %v2281 = vunpack.c.l.b16 %v2146
  %v2282 = vunpack.c.l.b16 %v2147
  %v2283 = vunpack.c.l.b16 %v2148
  %v2284 = vunpack.c.l.b16 %v2149
  %v2285 = vunpack.c.l.b16 %v2150
  %v2286 = vunpack.c.l.b16 %v2151
  %v2287 = vunpack.c.l.b16 %v2152
  %v2288 = vunpack.c.l.b16 %v2153
  %v2289 = vunpack.c.l.b16 %v2154
  %v2290 = vunpack.c.l.b16 %v2155
  %v2291 = vpack.c.b16 %v2228, %v2227
  %v2292 = vpack.c.b16 %v2230, %v2229
  %v2293 = vpack.c.b16 %v2232, %v2231
  %v2294 = vpack.c.b16 %v2234, %v2233
  %v2295 = vpack.c.b16 %v2236, %v2235
  %v2296 = vpack.c.b16 %v2238, %v2237
  %v2297 = vpack.c.b16 %v2240, %v2239
  %v2298 = vpack.c.b16 %v2242, %v2241
  %v2299 = vpack.c.b16 %v2244, %v2243
  %v2300 = vpack.c.b16 %v2246, %v2245
  %v2301 = vpack.c.b16 %v2248, %v2247
  %v2302 = vpack.c.b16 %v2250, %v2249
  %v2303 = vpack.c.b16 %v2252, %v2251
  %v2304 = vpack.c.b16 %v2254, %v2253
  %v2305 = vpack.c.b16 %v2256, %v2255
  %v2306 = vpack.c.b16 %v2258, %v2257
  %v2307 = vpack.c.b16 %v2260, %v2259
  %v2308 = vpack.c.b16 %v2262, %v2261
  %v2309 = vpack.c.b16 %v2264, %v2263
  %v2310 = vpack.c.b16 %v2266, %v2265
  %v2311 = vpack.c.b16 %v2268, %v2267
  %v2312 = vpack.c.b16 %v2270, %v2269
  %v2313 = vpack.c.b16 %v2272, %v2271
  %v2314 = vpack.c.b16 %v2274, %v2273
  %v2315 = vpack.c.b16 %v2276, %v2275
  %v2316 = vpack.c.b16 %v2278, %v2277
  %v2317 = vpack.c.b16 %v2280, %v2279
  %v2318 = vpack.c.b16 %v2282, %v2281
  %v2319 = vpack.c.b16 %v2284, %v2283
  %v2320 = vpack.c.b16 %v2286, %v2285
  %v2321 = vpack.c.b16 %v2288, %v2287
  %v2322 = vpack.c.b16 %v2290, %v2289
  %2355 = vmatprep.subr.bf16.mxu0 0
  %2356 = vmatpush1.bf16.msra.mxu0 %v2291
  %2357 = vmatprep.subr.bf16.mxu0 0
  %2358 = vmatpush1.bf16.msra.mxu0 %v2292
  %2359 = vmatprep.subr.bf16.mxu0 0
  %2360 = vmatpush1.bf16.msra.mxu0 %v2293
  %2361 = vmatprep.subr.bf16.mxu0 0
  %2362 = vmatpush1.bf16.msra.mxu0 %v2294
  %2363 = vmatprep.subr.bf16.mxu0 0
  %2364 = vmatpush1.bf16.msra.mxu0 %v2295
  %2365 = vmatprep.subr.bf16.mxu0 0
  %2366 = vmatpush1.bf16.msra.mxu0 %v2296
  %2367 = vmatprep.subr.bf16.mxu0 0
  %2368 = vmatpush1.bf16.msra.mxu0 %v2297
  %2369 = vmatprep.subr.bf16.mxu0 0
  %2370 = vmatpush1.bf16.msra.mxu0 %v2298
  %2371 = vmatprep.subr.bf16.mxu0 0
  %2372 = vmatpush1.bf16.msra.mxu0 %v2299
  %2373 = vmatprep.subr.bf16.mxu0 0
  %2374 = vmatpush1.bf16.msra.mxu0 %v2300
  %2375 = vmatprep.subr.bf16.mxu0 0
  %2376 = vmatpush1.bf16.msra.mxu0 %v2301
  %2377 = vmatprep.subr.bf16.mxu0 0
  %2378 = vmatpush1.bf16.msra.mxu0 %v2302
  %2379 = vmatprep.subr.bf16.mxu0 0
  %2380 = vmatpush1.bf16.msra.mxu0 %v2303
  %2381 = vmatprep.subr.bf16.mxu0 0
  %2382 = vmatpush1.bf16.msra.mxu0 %v2304
  %2383 = vmatprep.subr.bf16.mxu0 0
  %2384 = vmatpush1.bf16.msra.mxu0 %v2305
  %2385 = vmatprep.subr.bf16.mxu0 0
  %2386 = vmatpush1.bf16.msra.mxu0 %v2306
  %2387 = vmatprep.mubr.bf16.mxu0 %v2089
  %2388 = vmatmul.mubr.bf16.gmra.mrb[0].mxu0 %v2088
  %v2389 = vpop.f32.mrb[0].mxu0
  %v2390 = vadd.f32 %v2161, %v2389
  %v2391 = vpop.f32.mrb[0].mxu0
  %v2392 = vpop.f32.mrb[0].mxu0
  %v2393 = vpop.f32.mrb[0].mxu0
  %2394 = vdwg.mxu0
  %2395 = vmatprep.subr.bf16.mxu0 0
  %2396 = vmatpush1.bf16.msra.mxu0 %v2307
  %2397 = vmatprep.subr.bf16.mxu0 0
  %2398 = vmatpush1.bf16.msra.mxu0 %v2308
  %2399 = vmatprep.subr.bf16.mxu0 0
  %2400 = vmatpush1.bf16.msra.mxu0 %v2309
  %2401 = vmatprep.subr.bf16.mxu0 0
  %2402 = vmatpush1.bf16.msra.mxu0 %v2310
  %2403 = vmatprep.subr.bf16.mxu0 0
  %2404 = vmatpush1.bf16.msra.mxu0 %v2311
  %2405 = vmatprep.subr.bf16.mxu0 0
  %2406 = vmatpush1.bf16.msra.mxu0 %v2312
  %2407 = vmatprep.subr.bf16.mxu0 0
  %2408 = vmatpush1.bf16.msra.mxu0 %v2313
  %2409 = vmatprep.subr.bf16.mxu0 0
  %2410 = vmatpush1.bf16.msra.mxu0 %v2314
  %2411 = vmatprep.subr.bf16.mxu0 0
  %2412 = vmatpush1.bf16.msra.mxu0 %v2315
  %2413 = vmatprep.subr.bf16.mxu0 0
  %2414 = vmatpush1.bf16.msra.mxu0 %v2316
  %2415 = vmatprep.subr.bf16.mxu0 0
  %2416 = vmatpush1.bf16.msra.mxu0 %v2317
  %2417 = vmatprep.subr.bf16.mxu0 0
  %2418 = vmatpush1.bf16.msra.mxu0 %v2318
  %2419 = vmatprep.subr.bf16.mxu0 0
  %2420 = vmatpush1.bf16.msra.mxu0 %v2319
  %2421 = vmatprep.subr.bf16.mxu0 0
  %2422 = vmatpush1.bf16.msra.mxu0 %v2320
  %2423 = vmatprep.subr.bf16.mxu0 0
  %2424 = vmatpush1.bf16.msra.mxu0 %v2321
  %2425 = vmatprep.subr.bf16.mxu0 0
  %2426 = vmatpush1.bf16.msra.mxu0 %v2322
  %2427 = vmatprep.mubr.bf16.mxu0 %v2091
  %2428 = vmatmul.mubr.bf16.gmra.mrb[0].mxu0 %v2090
  %v2429 = vpop.f32.mrb[0].mxu0
  %v2430 = vadd.f32 %v2390, %v2429
  %v2431 = vpop.f32.mrb[0].mxu0
  %v2432 = vpop.f32.mrb[0].mxu0
  %v2433 = vpop.f32.mrb[0].mxu0
  %2434 = vdwg.mxu0
  %v2435 = vxor.u32 %v2430, 2147483648
  %v2436 = vmul.f32 %v2435, 1.442695
  %v2437 = vpow.pop %v2436
  %v2438 = vadd.f32 %v2437, 1.0
  %v2439 = vrcp.pop %v2438
  %v2440 = vmul.f32 1.0, %v2439
  %2441 = vst [vmem:[%s10] sm:$0xff] %v2440
  // Predicated region
  $region45: #{ro_inflect_forward.1} parent=0 // pred_check
    _
  $region46: #{ro_inflect_forward.1} parent=0 // pred_check_branch
    %2443 = sbr.rel (0) target = $region48
  $region47: #{ro_inflect_forward.1} parent=0 // pred_region
    _
  $region48: #{ro_inflect_forward.1} parent=0 // pred_fallthru
    _
  // Predicated region
  $region49: #{ro_inflect_forward.1} parent=0 // pred_check
    _
  $region50: #{ro_inflect_forward.1} parent=0 // pred_check_branch
    %2445 = sbr.rel (0) target = $region52
  $region51: #{ro_inflect_forward.1} parent=0 // pred_region
    _
  $region52: #{ro_inflect_forward.1} parent=0 // pred_fallthru
    _

</llo_original>
